<compile_context>
chip_gen: v5e
topology: v5e:2x2
jax: 0.10.0
libtpu: 0.0.40
codegen_flags: <defaults>
</compile_context>

<pallas_src>
import functools

import jax
import jax.numpy as jnp
from jax import lax
from jax.experimental import pallas as pl
from jax.experimental.pallas import tpu as pltpu


def _round_up(x: int, m: int) -> int:
    return ((x + m - 1) // m) * m


def _vmem_capacity_bytes() -> int:
    try:
        return int(pltpu.get_tpu_info().vmem_capacity_bytes)
    except Exception:
        return 64 * 2 ** 20          # conservative (v7x-sized) fallback


def _lane_target(cout: int) -> int:
    """128-lane padding everywhere except wide convs on 256-wide-MXU chips."""
    kind = ""
    try:
        kind = jax.devices()[0].device_kind.lower()
    except Exception:
        pass
    wide_mxu = ("v6" in kind) or ("v7" in kind)
    return 256 if (wide_mxu and cout > 128) else 128


def _const_spec(block_shape, index_map):
    """Single-buffered BlockSpec for operands whose block never changes."""
    try:
        return pl.BlockSpec(block_shape, index_map, pipeline_mode=pl.Buffered(1))
    except Exception:            # older JAX without pipeline_mode / Buffered
        return pl.BlockSpec(block_shape, index_map)


# ----------------------------- Pallas kernel ------------------------------- #

def make_fused_kernel(*, k, Ho, Wo, Cin, inv_m, eps, scr_dtype):
    """Fused implicit-im2col conv + batch-stats + BN + ReLU, grid = (2, N)."""

    def kernel(x_ref, w_ref, g_ref, b_ref, o_ref,
               conv_scr, sum_scr, ssq_scr, scale_scr, shift_scr):
        phase = pl.program_id(0)   # 0: conv + batch stats, 1: BN + ReLU
        i = pl.program_id(1)       # image index (one M-tile per image)

        @pl.when(jnp.logical_and(phase == 0, i == 0))
        def _init():
            sum_scr[...] = jnp.zeros_like(sum_scr)
            ssq_scr[...] = jnp.zeros_like(ssq_scr)
            # Defensive: output block 0 is resident but only written in phase 1.
            o_ref[...] = jnp.zeros_like(o_ref)

        @pl.when(phase == 0)
        def _conv_and_stats():
            x_img = x_ref[0]                                  # (Hp, Wp, Cin) bf16
            acc = None
            # Implicit im2col: k*k shifted sub-matmuls, f32 MXU accumulation.
            for dh in range(k):
                for dw in range(k):
                    xs = x_img[dh:dh + Ho, dw:dw + Wo, :]     # (Ho, Wo, Cin)
                    xs = xs.reshape(Ho * Wo, Cin)             # collapse leading dims
                    part = jnp.dot(xs, w_ref[dh, dw],
                                   preferred_element_type=jnp.float32)
                    acc = part if acc is None else acc + part
            conv_scr[i] = acc.astype(scr_dtype)               # stays resident in VMEM
            sum_scr[...] += acc.sum(axis=0, keepdims=True)
            ssq_scr[...] += (acc * acc).sum(axis=0, keepdims=True)

        @pl.when(jnp.logical_and(phase == 1, i == 0))
        def _scale_shift():
            mean = sum_scr[...] * inv_m
            # Biased variance (BatchNorm training mode); clamped vs cancellation.
            # TODO(synk): two-pass variance over the VMEM-resident conv result
            #             would be more robust when |mean| >> std.
            var = jnp.maximum(ssq_scr[...] * inv_m - mean * mean, 0.0)
            scale = g_ref[...] * lax.rsqrt(var + eps)         # EUP rsqrt
            scale_scr[...] = scale
            shift_scr[...] = b_ref[...] - mean * scale

        @pl.when(phase == 1)
        def _bn_relu():
            y = conv_scr[i].astype(jnp.float32) * scale_scr[...] + shift_scr[...]
            o_ref[0] = jnp.maximum(y, 0.0).astype(o_ref.dtype)

    return kernel


# ------------------------------- JAX glue ---------------------------------- #

@functools.partial(jax.jit, static_argnames=("stride", "eps", "out_dtype"))
def mobilenet_v3_block(x_nchw, weight, gamma, beta, *, stride=1, eps=1e-5,
                       out_dtype=jnp.float32):
    """Forward pass of MobileNetV3Block (bias=False, groups=1, bn=True, act=ReLU)."""
    N, Cin, H, W = x_nchw.shape
    Cout, wc_in, k, k2 = weight.shape
    assert k == k2
    assert wc_in == Cin, "groups > 1 (depthwise) not implemented"
    if stride != 1:
        # TODO(synk): stride > 1 via strided tap slices / halo'd row grid.
        raise NotImplementedError("fused implicit-im2col path only supports stride=1")

    pad = k // 2
    Hp, Wp = H + 2 * pad, W + 2 * pad
    Ho, Wo = H, W                                   # stride == 1, 'same' padding
    M = N * Ho * Wo
    tile_rows = Ho * Wo
    lane = _lane_target(Cout)
    Coutp = _round_up(Cout, lane)

    # NCHW -> zero-padded NHWC bf16.  Single cheap pass; no patch inflation.
    x_nhwc = jnp.transpose(x_nchw, (0, 2, 3, 1)).astype(jnp.bfloat16)
    x_pad = jnp.pad(x_nhwc, ((0, 0), (pad, pad), (pad, pad), (0, 0)))

    # PyTorch weight (Cout,Cin,kh,kw) -> (kh,kw,Cin,Coutp) bf16, zero-padded Cout.
    w4 = jnp.transpose(weight, (2, 3, 1, 0)).astype(jnp.float32)
    w4 = jnp.pad(w4, ((0, 0), (0, 0), (0, 0), (0, Coutp - Cout))).astype(jnp.bfloat16)

    # gamma padded with 1, beta with 0 -> padded channels stay finite (output 0).
    gamma_p = jnp.pad(gamma.reshape(1, Cout).astype(jnp.float32),
                      ((0, 0), (0, Coutp - Cout)), constant_values=1.0)
    beta_p = jnp.pad(beta.reshape(1, Cout).astype(jnp.float32),
                     ((0, 0), (0, Coutp - Cout)))

    # ---- generation-aware VMEM budget -------------------------------------- #
    vmem_cap = _vmem_capacity_bytes()
    budget = int(0.80 * vmem_cap)                   # headroom for compiler scratch
    out_bytes = jnp.dtype(out_dtype).itemsize
    io_bytes = (2 * Hp * Wp * Cin * 2               # double-buffered input image block
                + 2 * k * k * Cin * Coutp * 2       # weights (conservatively x2)
                + 4 * Coutp * 4                     # gamma / beta
                + 2 * tile_rows * Coutp * out_bytes # double-buffered output block
                + 8 * Coutp * 4)                    # sum/ssq/scale/shift + slack
    scr_elems = N * tile_rows * Coutp
    if scr_elems * 4 + io_bytes <= budget:
        scr_dtype = jnp.float32                     # full-precision resident conv result
    elif scr_elems * 2 + io_bytes <= budget:
        scr_dtype = jnp.bfloat16                    # halves resident scratch (v7x)
    else:
        # TODO(synk): spill conv intermediate to HBM (two-pass) for large maps.
        raise NotImplementedError("conv intermediate too large for VMEM-resident path")
    scr_bytes = scr_elems * jnp.dtype(scr_dtype).itemsize
    vmem_limit = int(min(vmem_cap,
                         max(32 * 2 ** 20, scr_bytes + io_bytes + 4 * 2 ** 20)))

    cost = pl.CostEstimate(
        flops=2 * M * k * k * Cin * Coutp + 8 * M * Coutp,
        transcendentals=Coutp,
        bytes_accessed=int(x_pad.size * 2 + w4.size * 2 + 4 * Coutp * 4
                           + M * Coutp * out_bytes),
    )

    kernel = make_fused_kernel(k=k, Ho=Ho, Wo=Wo, Cin=Cin,
                               inv_m=1.0 / M, eps=eps, scr_dtype=scr_dtype)

    out = pl.pallas_call(
        kernel,
        out_shape=jax.ShapeDtypeStruct((N, tile_rows, Coutp), out_dtype),
        grid=(2, N),
        in_specs=[
            # input image: block i in phase 0; pinned to the last-fetched block
            # in phase 1 -> no redundant DMA at the phase transition.
            pl.BlockSpec((1, Hp, Wp, Cin),
                         lambda p, i: (i * (1 - p) + (N - 1) * p, 0, 0, 0)),
            _const_spec((k, k, Cin, Coutp), lambda p, i: (0, 0, 0, 0)),  # weights
            _const_spec((1, Coutp), lambda p, i: (0, 0)),                # gamma
            _const_spec((1, Coutp), lambda p, i: (0, 0)),                # beta
        ],
        # written only in phase 1 (phase 0 pins every step to block 0, which is
        # then overwritten by phase 1's first step before any flush).
        out_specs=pl.BlockSpec((1, tile_rows, Coutp), lambda p, i: (i * p, 0, 0)),
        scratch_shapes=[
            pltpu.VMEM((N, tile_rows, Coutp), scr_dtype),  # VMEM-resident conv result
            pltpu.VMEM((1, Coutp), jnp.float32),           # per-channel sum
            pltpu.VMEM((1, Coutp), jnp.float32),           # per-channel sum of squares
            pltpu.VMEM((1, Coutp), jnp.float32),           # hoisted BN scale
            pltpu.VMEM((1, Coutp), jnp.float32),           # hoisted BN shift
        ],
        # Both axes sequential: stats accumulate across images and phase 1
        # depends on phase 0 (see megacore TODO above).
        compiler_params=pltpu.CompilerParams(
            dimension_semantics=("arbitrary", "arbitrary"),
            vmem_limit_bytes=vmem_limit,
        ),
        cost_estimate=cost,
    )(x_pad, w4, gamma_p, beta_p)

    out = out[:, :, :Cout].reshape(N, Ho, Wo, Cout)
    return jnp.transpose(out, (0, 3, 1, 2)).astype(jnp.float32)   # back to NCHW


def reference(x_nchw, weight, gamma, beta, *, stride=1, eps=1e-5):
    """Pure-JAX reference mirroring PyTorch Conv2d + BatchNorm2d(train) + ReLU."""
    x = jnp.transpose(x_nchw, (0, 2, 3, 1)).astype(jnp.float32)
    w = jnp.transpose(weight, (2, 3, 1, 0)).astype(jnp.float32)   # HWIO
    pad = weight.shape[-1] // 2
    y = lax.conv_general_dilated(
        x, w, (stride, stride), [(pad, pad), (pad, pad)],
        dimension_numbers=("NHWC", "HWIO", "NHWC"))
    mean = y.mean(axis=(0, 1, 2), keepdims=True)
    var = ((y - mean) ** 2).mean(axis=(0, 1, 2), keepdims=True)   # biased
    yn = (y - mean) * lax.rsqrt(var + eps) * gamma.reshape(1, 1, 1, -1) + beta.reshape(1, 1, 1, -1)
    return jnp.transpose(jnp.maximum(yn, 0.0), (0, 3, 1, 2))


# --------------------------------- main ------------------------------------ #

if __name__ == "__main__":
    # MobileNetV3Block(in_channels=4, out_channels=8, kernel_size=3, stride=1)
    N, Cin, H, W = 2, 4, 16, 16
    Cout, k, stride = 8, 3, 1

    key = jax.random.PRNGKey(0)
    k_x, k_w, k_g, k_b = jax.random.split(key, 4)

    x = jax.random.normal(k_x, (N, Cin, H, W), dtype=jnp.float32)
    fan_in = Cin * k * k
    weight = jax.random.normal(k_w, (Cout, Cin, k, k), dtype=jnp.float32) / jnp.sqrt(fan_in)
    gamma = 1.0 + 0.1 * jax.random.normal(k_g, (Cout,), dtype=jnp.float32)
    beta = 0.1 * jax.random.normal(k_b, (Cout,), dtype=jnp.float32)

    out = mobilenet_v3_block(x, weight, gamma, beta, stride=stride)
    out = jax.block_until_ready(out)
    assert out.shape == (N, Cout, H, W), out.shape

    # 1) Loose check vs full-f32 module semantics (error budget: bf16 conv inputs).
    ref_f32 = reference(x, weight, gamma, beta, stride=stride)
    err_f32 = float(jnp.max(jnp.abs(out - ref_f32)))
    assert jnp.allclose(out, ref_f32, rtol=3e-2, atol=3e-2), err_f32

    # 2) Tight check vs the same math with inputs pre-rounded to bf16 (isolates
    #    kernel plumbing / BN-stat correctness from the intentional bf16 cast).
    x_q = x.astype(jnp.bfloat16).astype(jnp.float32)
    w_q = weight.astype(jnp.bfloat16).astype(jnp.float32)
    ref_bf16 = reference(x_q, w_q, gamma, beta, stride=stride)
    err_bf16 = float(jnp.max(jnp.abs(out - ref_bf16)))
    assert jnp.allclose(out, ref_bf16, rtol=3e-3, atol=3e-3), err_bf16

    print("KERNEL_OK")
</pallas_src>

<mosaic_0001>
module attributes {stable_mosaic.version = 11 : i64} {
  func.func @kernel(%arg0: i32, %arg1: i32, %arg2: memref<1x18x18x4xbf16, #tpu.memory_space<vmem>>, %arg3: memref<3x3x4x128xbf16, #tpu.memory_space<vmem>>, %arg4: memref<1x128xf32, #tpu.memory_space<vmem>>, %arg5: memref<1x128xf32, #tpu.memory_space<vmem>>, %arg6: memref<1x256x128xf32, #tpu.memory_space<vmem>>, %arg7: memref<2x256x128xf32, #tpu.memory_space<vmem>>, %arg8: memref<1x128xf32, #tpu.memory_space<vmem>>, %arg9: memref<1x128xf32, #tpu.memory_space<vmem>>, %arg10: memref<1x128xf32, #tpu.memory_space<vmem>>, %arg11: memref<1x128xf32, #tpu.memory_space<vmem>>) attributes {dimension_semantics = [#tpu.dimension_semantics<arbitrary>, #tpu.dimension_semantics<arbitrary>], iteration_bounds = array<i64: 2, 2>, scalar_prefetch = 0 : i64, scratch_operands = 5 : i64, tpu.core_type = #tpu.core_type<tc>, window_params = [{transform_indices = @transform_0, window_bounds = array<i64: 1, 18, 18, 4>}, {pipeline_mode = #tpu.pipeline_mode<synchronous>, transform_indices = @transform_1, window_bounds = array<i64: 3, 3, 4, 128>}, {pipeline_mode = #tpu.pipeline_mode<synchronous>, transform_indices = @transform_2, window_bounds = array<i64: 1, 128>}, {pipeline_mode = #tpu.pipeline_mode<synchronous>, transform_indices = @transform_3, window_bounds = array<i64: 1, 128>}, {transform_indices = @transform_4, window_bounds = array<i64: 1, 256, 128>}]} {
    %c0_i32 = arith.constant 0 : i32
    %0 = arith.cmpi eq, %arg0, %c0_i32 : i32
    %c0_i32_0 = arith.constant 0 : i32
    %1 = arith.cmpi eq, %arg1, %c0_i32_0 : i32
    %2 = arith.andi %0, %1 : i1
    %3 = arith.extui %2 : i1 to i32
    %c0_i32_1 = arith.constant 0 : i32
    %4 = arith.cmpi ne, %3, %c0_i32_1 : i32
    scf.if %4 {
      %cst = arith.constant 0.000000e+00 : f32
      %16 = vector.broadcast %cst : f32 to vector<1x128xf32>
      %c0 = arith.constant 0 : index
      %c0_8 = arith.constant 0 : index
      %17 = vector.load %arg8[%c0, %c0_8] : memref<1x128xf32, #tpu.memory_space<vmem>>, vector<1x128xf32>
      tpu.vector_store %arg8[%c0, %c0_8], %16 {strides = array<i32>} : memref<1x128xf32, #tpu.memory_space<vmem>>, vector<1x128xf32>,
      %cst_9 = arith.constant 0.000000e+00 : f32
      %18 = vector.broadcast %cst_9 : f32 to vector<1x128xf32>
      %c0_10 = arith.constant 0 : index
      %c0_11 = arith.constant 0 : index
      %19 = vector.load %arg9[%c0_10, %c0_11] : memref<1x128xf32, #tpu.memory_space<vmem>>, vector<1x128xf32>
      tpu.vector_store %arg9[%c0_10, %c0_11], %18 {strides = array<i32>} : memref<1x128xf32, #tpu.memory_space<vmem>>, vector<1x128xf32>,
      %cst_12 = arith.constant 0.000000e+00 : f32
      %20 = vector.broadcast %cst_12 : f32 to vector<1x256x128xf32>
      %c0_13 = arith.constant 0 : index
      %c0_14 = arith.constant 0 : index
      %c0_15 = arith.constant 0 : index
      %21 = vector.load %arg6[%c0_13, %c0_14, %c0_15] : memref<1x256x128xf32, #tpu.memory_space<vmem>>, vector<1x256x128xf32>
      tpu.vector_store %arg6[%c0_13, %c0_14, %c0_15], %20 {strides = array<i32>} : memref<1x256x128xf32, #tpu.memory_space<vmem>>, vector<1x256x128xf32>,
    } else {
    }
    %c0_i32_2 = arith.constant 0 : i32
    %5 = arith.cmpi eq, %arg0, %c0_i32_2 : i32
    %6 = arith.extui %5 : i1 to i32
    %c0_i32_3 = arith.constant 0 : i32
    %7 = arith.cmpi ne, %6, %c0_i32_3 : i32
    scf.if %7 {
      %c0 = arith.constant 0 : index
      %c0_8 = arith.constant 0 : index
      %c0_9 = arith.constant 0 : index
      %c0_10 = arith.constant 0 : index
      %16 = vector.load %arg2[%c0, %c0_8, %c0_9, %c0_10] : memref<1x18x18x4xbf16, #tpu.memory_space<vmem>>, vector<1x18x18x4xbf16>
      %17 = vector.shape_cast %16 : vector<1x18x18x4xbf16> to vector<18x18x4xbf16>
      %18 = vector.extract_strided_slice %17 {offsets = [0, 0, 0], sizes = [16, 16, 4], strides = [1, 1, 1]} : vector<18x18x4xbf16> to vector<16x16x4xbf16>
      %19 = vector.shape_cast %18 : vector<16x16x4xbf16> to vector<256x4xbf16>
      %c0_11 = arith.constant 0 : index
      %c0_12 = arith.constant 0 : index
      %c0_13 = arith.constant 0 : index
      %c0_14 = arith.constant 0 : index
      %20 = vector.load %arg3[%c0_11, %c0_12, %c0_13, %c0_14] : memref<3x3x4x128xbf16, #tpu.memory_space<vmem>>, vector<1x1x4x128xbf16>
      %21 = vector.shape_cast %20 : vector<1x1x4x128xbf16> to vector<4x128xbf16>
      %cst = arith.constant dense<0.000000e+00> : vector<256x128xf32>
      %22 = tpu.matmul %19, %21, %cst {dimension_numbers = #tpu.dot_dimension_numbers<[1], [0], [0], [1], [0, 0, 1, 1], [], []>} : vector<256x4xbf16>, vector<4x128xbf16>, vector<256x128xf32> -> vector<256x128xf32>
      %23 = vector.extract_strided_slice %17 {offsets = [0, 1, 0], sizes = [16, 16, 4], strides = [1, 1, 1]} : vector<18x18x4xbf16> to vector<16x16x4xbf16>
      %24 = vector.shape_cast %23 : vector<16x16x4xbf16> to vector<256x4xbf16>
      %c0_15 = arith.constant 0 : index
      %c1 = arith.constant 1 : index
      %c0_16 = arith.constant 0 : index
      %c0_17 = arith.constant 0 : index
      %25 = vector.load %arg3[%c0_15, %c1, %c0_16, %c0_17] : memref<3x3x4x128xbf16, #tpu.memory_space<vmem>>, vector<1x1x4x128xbf16>
      %26 = vector.shape_cast %25 : vector<1x1x4x128xbf16> to vector<4x128xbf16>
      %cst_18 = arith.constant dense<0.000000e+00> : vector<256x128xf32>
      %27 = tpu.matmul %24, %26, %cst_18 {dimension_numbers = #tpu.dot_dimension_numbers<[1], [0], [0], [1], [0, 0, 1, 1], [], []>} : vector<256x4xbf16>, vector<4x128xbf16>, vector<256x128xf32> -> vector<256x128xf32>
      %28 = arith.addf %22, %27 : vector<256x128xf32>
      %29 = vector.extract_strided_slice %17 {offsets = [0, 2, 0], sizes = [16, 16, 4], strides = [1, 1, 1]} : vector<18x18x4xbf16> to vector<16x16x4xbf16>
      %30 = vector.shape_cast %29 : vector<16x16x4xbf16> to vector<256x4xbf16>
      %c0_19 = arith.constant 0 : index
      %c2 = arith.constant 2 : index
      %c0_20 = arith.constant 0 : index
      %c0_21 = arith.constant 0 : index
      %31 = vector.load %arg3[%c0_19, %c2, %c0_20, %c0_21] : memref<3x3x4x128xbf16, #tpu.memory_space<vmem>>, vector<1x1x4x128xbf16>
      %32 = vector.shape_cast %31 : vector<1x1x4x128xbf16> to vector<4x128xbf16>
      %cst_22 = arith.constant dense<0.000000e+00> : vector<256x128xf32>
      %33 = tpu.matmul %30, %32, %cst_22 {dimension_numbers = #tpu.dot_dimension_numbers<[1], [0], [0], [1], [0, 0, 1, 1], [], []>} : vector<256x4xbf16>, vector<4x128xbf16>, vector<256x128xf32> -> vector<256x128xf32>
      %34 = arith.addf %28, %33 : vector<256x128xf32>
      %35 = vector.extract_strided_slice %17 {offsets = [1, 0, 0], sizes = [16, 16, 4], strides = [1, 1, 1]} : vector<18x18x4xbf16> to vector<16x16x4xbf16>
      %36 = vector.shape_cast %35 : vector<16x16x4xbf16> to vector<256x4xbf16>
      %c1_23 = arith.constant 1 : index
      %c0_24 = arith.constant 0 : index
      %c0_25 = arith.constant 0 : index
      %c0_26 = arith.constant 0 : index
      %37 = vector.load %arg3[%c1_23, %c0_24, %c0_25, %c0_26] : memref<3x3x4x128xbf16, #tpu.memory_space<vmem>>, vector<1x1x4x128xbf16>
      %38 = vector.shape_cast %37 : vector<1x1x4x128xbf16> to vector<4x128xbf16>
      %cst_27 = arith.constant dense<0.000000e+00> : vector<256x128xf32>
      %39 = tpu.matmul %36, %38, %cst_27 {dimension_numbers = #tpu.dot_dimension_numbers<[1], [0], [0], [1], [0, 0, 1, 1], [], []>} : vector<256x4xbf16>, vector<4x128xbf16>, vector<256x128xf32> -> vector<256x128xf32>
      %40 = arith.addf %34, %39 : vector<256x128xf32>
      %41 = vector.extract_strided_slice %17 {offsets = [1, 1, 0], sizes = [16, 16, 4], strides = [1, 1, 1]} : vector<18x18x4xbf16> to vector<16x16x4xbf16>
      %42 = vector.shape_cast %41 : vector<16x16x4xbf16> to vector<256x4xbf16>
      %c1_28 = arith.constant 1 : index
      %c1_29 = arith.constant 1 : index
      %c0_30 = arith.constant 0 : index
      %c0_31 = arith.constant 0 : index
      %43 = vector.load %arg3[%c1_28, %c1_29, %c0_30, %c0_31] : memref<3x3x4x128xbf16, #tpu.memory_space<vmem>>, vector<1x1x4x128xbf16>
      %44 = vector.shape_cast %43 : vector<1x1x4x128xbf16> to vector<4x128xbf16>
      %cst_32 = arith.constant dense<0.000000e+00> : vector<256x128xf32>
      %45 = tpu.matmul %42, %44, %cst_32 {dimension_numbers = #tpu.dot_dimension_numbers<[1], [0], [0], [1], [0, 0, 1, 1], [], []>} : vector<256x4xbf16>, vector<4x128xbf16>, vector<256x128xf32> -> vector<256x128xf32>
      %46 = arith.addf %40, %45 : vector<256x128xf32>
      %47 = vector.extract_strided_slice %17 {offsets = [1, 2, 0], sizes = [16, 16, 4], strides = [1, 1, 1]} : vector<18x18x4xbf16> to vector<16x16x4xbf16>
      %48 = vector.shape_cast %47 : vector<16x16x4xbf16> to vector<256x4xbf16>
      %c1_33 = arith.constant 1 : index
      %c2_34 = arith.constant 2 : index
      %c0_35 = arith.constant 0 : index
      %c0_36 = arith.constant 0 : index
      %49 = vector.load %arg3[%c1_33, %c2_34, %c0_35, %c0_36] : memref<3x3x4x128xbf16, #tpu.memory_space<vmem>>, vector<1x1x4x128xbf16>
      %50 = vector.shape_cast %49 : vector<1x1x4x128xbf16> to vector<4x128xbf16>
      %cst_37 = arith.constant dense<0.000000e+00> : vector<256x128xf32>
      %51 = tpu.matmul %48, %50, %cst_37 {dimension_numbers = #tpu.dot_dimension_numbers<[1], [0], [0], [1], [0, 0, 1, 1], [], []>} : vector<256x4xbf16>, vector<4x128xbf16>, vector<256x128xf32> -> vector<256x128xf32>
      %52 = arith.addf %46, %51 : vector<256x128xf32>
      %53 = vector.extract_strided_slice %17 {offsets = [2, 0, 0], sizes = [16, 16, 4], strides = [1, 1, 1]} : vector<18x18x4xbf16> to vector<16x16x4xbf16>
      %54 = vector.shape_cast %53 : vector<16x16x4xbf16> to vector<256x4xbf16>
      %c2_38 = arith.constant 2 : index
      %c0_39 = arith.constant 0 : index
      %c0_40 = arith.constant 0 : index
      %c0_41 = arith.constant 0 : index
      %55 = vector.load %arg3[%c2_38, %c0_39, %c0_40, %c0_41] : memref<3x3x4x128xbf16, #tpu.memory_space<vmem>>, vector<1x1x4x128xbf16>
      %56 = vector.shape_cast %55 : vector<1x1x4x128xbf16> to vector<4x128xbf16>
      %cst_42 = arith.constant dense<0.000000e+00> : vector<256x128xf32>
      %57 = tpu.matmul %54, %56, %cst_42 {dimension_numbers = #tpu.dot_dimension_numbers<[1], [0], [0], [1], [0, 0, 1, 1], [], []>} : vector<256x4xbf16>, vector<4x128xbf16>, vector<256x128xf32> -> vector<256x128xf32>
      %58 = arith.addf %52, %57 : vector<256x128xf32>
      %59 = vector.extract_strided_slice %17 {offsets = [2, 1, 0], sizes = [16, 16, 4], strides = [1, 1, 1]} : vector<18x18x4xbf16> to vector<16x16x4xbf16>
      %60 = vector.shape_cast %59 : vector<16x16x4xbf16> to vector<256x4xbf16>
      %c2_43 = arith.constant 2 : index
      %c1_44 = arith.constant 1 : index
      %c0_45 = arith.constant 0 : index
      %c0_46 = arith.constant 0 : index
      %61 = vector.load %arg3[%c2_43, %c1_44, %c0_45, %c0_46] : memref<3x3x4x128xbf16, #tpu.memory_space<vmem>>, vector<1x1x4x128xbf16>
      %62 = vector.shape_cast %61 : vector<1x1x4x128xbf16> to vector<4x128xbf16>
      %cst_47 = arith.constant dense<0.000000e+00> : vector<256x128xf32>
      %63 = tpu.matmul %60, %62, %cst_47 {dimension_numbers = #tpu.dot_dimension_numbers<[1], [0], [0], [1], [0, 0, 1, 1], [], []>} : vector<256x4xbf16>, vector<4x128xbf16>, vector<256x128xf32> -> vector<256x128xf32>
      %64 = arith.addf %58, %63 : vector<256x128xf32>
      %65 = vector.extract_strided_slice %17 {offsets = [2, 2, 0], sizes = [16, 16, 4], strides = [1, 1, 1]} : vector<18x18x4xbf16> to vector<16x16x4xbf16>
      %66 = vector.shape_cast %65 : vector<16x16x4xbf16> to vector<256x4xbf16>
      %c2_48 = arith.constant 2 : index
      %c2_49 = arith.constant 2 : index
      %c0_50 = arith.constant 0 : index
      %c0_51 = arith.constant 0 : index
      %67 = vector.load %arg3[%c2_48, %c2_49, %c0_50, %c0_51] : memref<3x3x4x128xbf16, #tpu.memory_space<vmem>>, vector<1x1x4x128xbf16>
      %68 = vector.shape_cast %67 : vector<1x1x4x128xbf16> to vector<4x128xbf16>
      %cst_52 = arith.constant dense<0.000000e+00> : vector<256x128xf32>
      %69 = tpu.matmul %66, %68, %cst_52 {dimension_numbers = #tpu.dot_dimension_numbers<[1], [0], [0], [1], [0, 0, 1, 1], [], []>} : vector<256x4xbf16>, vector<4x128xbf16>, vector<256x128xf32> -> vector<256x128xf32>
      %70 = arith.addf %64, %69 : vector<256x128xf32>
      %71 = arith.index_cast %arg1 : i32 to index
      %c0_53 = arith.constant 0 : index
      %c0_54 = arith.constant 0 : index
      %72 = vector.load %arg7[%71, %c0_53, %c0_54] : memref<2x256x128xf32, #tpu.memory_space<vmem>>, vector<1x256x128xf32>
      %73 = vector.shape_cast %72 : vector<1x256x128xf32> to vector<256x128xf32>
      %74 = vector.shape_cast %70 : vector<256x128xf32> to vector<1x256x128xf32>
      tpu.vector_store %arg7[%71, %c0_53, %c0_54], %74 {strides = array<i32>} : memref<2x256x128xf32, #tpu.memory_space<vmem>>, vector<1x256x128xf32>,
      %c0_55 = arith.constant 0 : index
      %c0_56 = arith.constant 0 : index
      %75 = vector.load %arg8[%c0_55, %c0_56] : memref<1x128xf32, #tpu.memory_space<vmem>>, vector<1x128xf32>
      %cst_57 = arith.constant dense<0.000000e+00> : vector<128xf32>
      %76 = vector.multi_reduction <add>, %70, %cst_57 [0] : vector<256x128xf32> to vector<128xf32>
      %77 = vector.shape_cast %76 : vector<128xf32> to vector<1x128xf32>
      %78 = arith.addf %75, %77 : vector<1x128xf32>
      %c0_58 = arith.constant 0 : index
      %c0_59 = arith.constant 0 : index
      %79 = vector.load %arg8[%c0_58, %c0_59] : memref<1x128xf32, #tpu.memory_space<vmem>>, vector<1x128xf32>
      tpu.vector_store %arg8[%c0_58, %c0_59], %78 {strides = array<i32>} : memref<1x128xf32, #tpu.memory_space<vmem>>, vector<1x128xf32>,
      %c0_60 = arith.constant 0 : index
      %c0_61 = arith.constant 0 : index
      %80 = vector.load %arg9[%c0_60, %c0_61] : memref<1x128xf32, #tpu.memory_space<vmem>>, vector<1x128xf32>
      %81 = arith.mulf %70, %70 : vector<256x128xf32>
      %cst_62 = arith.constant dense<0.000000e+00> : vector<128xf32>
      %82 = vector.multi_reduction <add>, %81, %cst_62 [0] : vector<256x128xf32> to vector<128xf32>
      %83 = vector.shape_cast %82 : vector<128xf32> to vector<1x128xf32>
      %84 = arith.addf %80, %83 : vector<1x128xf32>
      %c0_63 = arith.constant 0 : index
      %c0_64 = arith.constant 0 : index
      %85 = vector.load %arg9[%c0_63, %c0_64] : memref<1x128xf32, #tpu.memory_space<vmem>>, vector<1x128xf32>
      tpu.vector_store %arg9[%c0_63, %c0_64], %84 {strides = array<i32>} : memref<1x128xf32, #tpu.memory_space<vmem>>, vector<1x128xf32>,
    } else {
    }
    %c1_i32 = arith.constant 1 : i32
    %8 = arith.cmpi eq, %arg0, %c1_i32 : i32
    %c0_i32_4 = arith.constant 0 : i32
    %9 = arith.cmpi eq, %arg1, %c0_i32_4 : i32
    %10 = arith.andi %8, %9 : i1
    %11 = arith.extui %10 : i1 to i32
    %c0_i32_5 = arith.constant 0 : i32
    %12 = arith.cmpi ne, %11, %c0_i32_5 : i32
    scf.if %12 {
      %c0 = arith.constant 0 : index
      %c0_8 = arith.constant 0 : index
      %16 = vector.load %arg8[%c0, %c0_8] : memref<1x128xf32, #tpu.memory_space<vmem>>, vector<1x128xf32>
      %cst = arith.constant 0.001953125 : f32
      %17 = vector.broadcast %cst : f32 to vector<1x128xf32>
      %18 = arith.mulf %16, %17 : vector<1x128xf32>
      %c0_9 = arith.constant 0 : index
      %c0_10 = arith.constant 0 : index
      %19 = vector.load %arg9[%c0_9, %c0_10] : memref<1x128xf32, #tpu.memory_space<vmem>>, vector<1x128xf32>
      %cst_11 = arith.constant 0.001953125 : f32
      %20 = vector.broadcast %cst_11 : f32 to vector<1x128xf32>
      %21 = arith.mulf %19, %20 : vector<1x128xf32>
      %22 = arith.mulf %18, %18 : vector<1x128xf32>
      %23 = arith.subf %21, %22 : vector<1x128xf32>
      %cst_12 = arith.constant 0.000000e+00 : f32
      %24 = vector.broadcast %cst_12 : f32 to vector<1x128xf32>
      %25 = arith.maximumf %23, %24 : vector<1x128xf32>
      %c0_13 = arith.constant 0 : index
      %c0_14 = arith.constant 0 : index
      %26 = vector.load %arg4[%c0_13, %c0_14] : memref<1x128xf32, #tpu.memory_space<vmem>>, vector<1x128xf32>
      %cst_15 = arith.constant 9.99999974E-6 : f32
      %27 = vector.broadcast %cst_15 : f32 to vector<1x128xf32>
      %28 = arith.addf %25, %27 : vector<1x128xf32>
      %29 = math.rsqrt %28 : vector<1x128xf32>
      %30 = arith.mulf %26, %29 : vector<1x128xf32>
      %c0_16 = arith.constant 0 : index
      %c0_17 = arith.constant 0 : index
      %31 = vector.load %arg10[%c0_16, %c0_17] : memref<1x128xf32, #tpu.memory_space<vmem>>, vector<1x128xf32>
      tpu.vector_store %arg10[%c0_16, %c0_17], %30 {strides = array<i32>} : memref<1x128xf32, #tpu.memory_space<vmem>>, vector<1x128xf32>,
      %c0_18 = arith.constant 0 : index
      %c0_19 = arith.constant 0 : index
      %32 = vector.load %arg5[%c0_18, %c0_19] : memref<1x128xf32, #tpu.memory_space<vmem>>, vector<1x128xf32>
      %33 = arith.mulf %18, %30 : vector<1x128xf32>
      %34 = arith.subf %32, %33 : vector<1x128xf32>
      %c0_20 = arith.constant 0 : index
      %c0_21 = arith.constant 0 : index
      %35 = vector.load %arg11[%c0_20, %c0_21] : memref<1x128xf32, #tpu.memory_space<vmem>>, vector<1x128xf32>
      tpu.vector_store %arg11[%c0_20, %c0_21], %34 {strides = array<i32>} : memref<1x128xf32, #tpu.memory_space<vmem>>, vector<1x128xf32>,
    } else {
    }
    %c1_i32_6 = arith.constant 1 : i32
    %13 = arith.cmpi eq, %arg0, %c1_i32_6 : i32
    %14 = arith.extui %13 : i1 to i32
    %c0_i32_7 = arith.constant 0 : i32
    %15 = arith.cmpi ne, %14, %c0_i32_7 : i32
    scf.if %15 {
      %16 = arith.index_cast %arg1 : i32 to index
      %c0 = arith.constant 0 : index
      %c0_8 = arith.constant 0 : index
      %17 = vector.load %arg7[%16, %c0, %c0_8] : memref<2x256x128xf32, #tpu.memory_space<vmem>>, vector<1x256x128xf32>
      %18 = vector.shape_cast %17 : vector<1x256x128xf32> to vector<256x128xf32>
      %c0_9 = arith.constant 0 : index
      %c0_10 = arith.constant 0 : index
      %19 = vector.load %arg10[%c0_9, %c0_10] : memref<1x128xf32, #tpu.memory_space<vmem>>, vector<1x128xf32>
      %20 = vector.broadcast %19 : vector<1x128xf32> to vector<256x128xf32>
      %21 = arith.mulf %18, %20 : vector<256x128xf32>
      %c0_11 = arith.constant 0 : index
      %c0_12 = arith.constant 0 : index
      %22 = vector.load %arg11[%c0_11, %c0_12] : memref<1x128xf32, #tpu.memory_space<vmem>>, vector<1x128xf32>
      %23 = vector.broadcast %22 : vector<1x128xf32> to vector<256x128xf32>
      %24 = arith.addf %21, %23 : vector<256x128xf32>
      %cst = arith.constant 0.000000e+00 : f32
      %25 = vector.broadcast %cst : f32 to vector<256x128xf32>
      %26 = arith.maximumf %24, %25 : vector<256x128xf32>
      %c0_13 = arith.constant 0 : index
      %c0_14 = arith.constant 0 : index
      %c0_15 = arith.constant 0 : index
      %27 = vector.load %arg6[%c0_13, %c0_14, %c0_15] : memref<1x256x128xf32, #tpu.memory_space<vmem>>, vector<1x256x128xf32>
      %28 = vector.shape_cast %27 : vector<1x256x128xf32> to vector<256x128xf32>
      %29 = vector.shape_cast %26 : vector<256x128xf32> to vector<1x256x128xf32>
      tpu.vector_store %arg6[%c0_13, %c0_14, %c0_15], %29 {strides = array<i32>} : memref<1x256x128xf32, #tpu.memory_space<vmem>>, vector<1x256x128xf32>,
    } else {
    }
    return
  }
  func.func @transform_0(%arg0: i32, %arg1: i32) -> (i32, i32, i32, i32) {
    %c1_i32 = arith.constant 1 : i32
    %0 = arith.subi %c1_i32, %arg0 : i32
    %1 = arith.muli %arg1, %0 : i32
    %c1_i32_0 = arith.constant 1 : i32
    %2 = arith.muli %c1_i32_0, %arg0 : i32
    %3 = arith.addi %1, %2 : i32
    %c0_i32 = arith.constant 0 : i32
    %c0_i32_1 = arith.constant 0 : i32
    %c0_i32_2 = arith.constant 0 : i32
    %c0_i32_3 = arith.constant 0 : i32
    return %3, %c0_i32, %c0_i32_1, %c0_i32_2 : i32, i32, i32, i32
  }
  func.func @transform_1(%arg0: i32, %arg1: i32) -> (i32, i32, i32, i32) {
    %c0_i32 = arith.constant 0 : i32
    %c0_i32_0 = arith.constant 0 : i32
    %c0_i32_1 = arith.constant 0 : i32
    %c0_i32_2 = arith.constant 0 : i32
    %c0_i32_3 = arith.constant 0 : i32
    return %c0_i32, %c0_i32_0, %c0_i32_1, %c0_i32_2 : i32, i32, i32, i32
  }
  func.func @transform_2(%arg0: i32, %arg1: i32) -> (i32, i32) {
    %c0_i32 = arith.constant 0 : i32
    %c0_i32_0 = arith.constant 0 : i32
    %c0_i32_1 = arith.constant 0 : i32
    return %c0_i32, %c0_i32_0 : i32, i32
  }
  func.func @transform_3(%arg0: i32, %arg1: i32) -> (i32, i32) {
    %c0_i32 = arith.constant 0 : i32
    %c0_i32_0 = arith.constant 0 : i32
    %c0_i32_1 = arith.constant 0 : i32
    return %c0_i32, %c0_i32_0 : i32, i32
  }
  func.func @transform_4(%arg0: i32, %arg1: i32) -> (i32, i32, i32) {
    %0 = arith.muli %arg1, %arg0 : i32
    %c0_i32 = arith.constant 0 : i32
    %c0_i32_0 = arith.constant 0 : i32
    %c0_i32_1 = arith.constant 0 : i32
    return %0, %c0_i32, %c0_i32_0 : i32, i32, i32
  }
}

</mosaic_0001>

<llo_original>
// kernel: mobilenet_v3_block.1
$region0: #{mobilenet_v3_block.1}
  #allocation0 [shape = 'u32[]', space=smem, size = 0x4, offset = 0x4, fixed_abs, tag = 'smem constant byte address 0x4 - core index']
  #allocation1 [shape = 'u32[72,128]{1,0:T(1,128)}', space=vmem, size = 0x9000, scoped, tag = 'internal scratch']
  #allocation2 [shape = 'f32[2,256,128]{2,1,0:T(8,128)}', space=vmem, size = 0x40000, scoped, tag = 'scratch operand']
  #allocation3 [shape = 'f32[1,128]{1,0:T(1,128)}', space=vmem, size = 0x200, scoped, tag = 'scratch operand']
  #allocation4 [shape = 'f32[1,128]{1,0:T(1,128)}', space=vmem, size = 0x200, scoped, tag = 'scratch operand']
  #allocation5 [shape = 'f32[1,128]{1,0:T(1,128)}', space=vmem, size = 0x200, scoped, tag = 'scratch operand']
  #allocation6 [shape = 'f32[1,128]{1,0:T(1,128)}', space=vmem, size = 0x200, scoped, tag = 'scratch operand']
  %s0 = inlined_call_operand.vmem [shape: bf16[2,18,18,4], index: 0, kind: input, shape index: {}]
  %s1 = inlined_call_operand.vmem [shape: bf16[3,3,4,128], index: 1, kind: input, shape index: {}]
  %s2 = inlined_call_operand.vmem [shape: f32[1,128], index: 2, kind: input, shape index: {}]
  %s3 = inlined_call_operand.vmem [shape: f32[1,128], index: 3, kind: input, shape index: {}]
  %s4 = inlined_call_operand.vmem [shape: f32[2,256,128], index: 4, kind: output, shape index: {}]
  %s5 = sld [smem:[#allocation0]]
  $region65: #{mobilenet_v3_block.1} parent=0
    _
  %s7 = ssub.s32 1, %s5
  %s8 = scalar_select 0, %s7, %s5
  loop: start=0, step=1, limit=6
  $region2: #{mobilenet_v3_block.1} parent=0 // loop_pre_header
    _
  $region3: #{mobilenet_v3_block.1} parent=0 // loop_header
    %s10 = sphi 0, %s14
    %p11 = scmp.ge.s32.totalorder %s10, 6
    %s17 = sphi 0, %s29
    %s18 = sphi 0, %s25
    %s19 = sphi 0, %s17
    %s20 = sphi 0, %s18
    %s21 = sphi 0, %s19
    %s22 = sphi 0, %s20
    %s38 = sphi 0, %s40
    %s41 = sphi 0, %s38
    %s42 = sphi 0, %s41
    %s58 = sphi 0, %s42
    %s62 = sphi 0, %s62
    %s64 = sphi 0, %s62
    %s65 = sphi 0, %s64
    %s79 = sphi 0, %s65
    %s83 = sphi 0, %s83
    %s85 = sphi 0, %s83
    %s86 = sphi 0, %s85
    %s100 = sphi 0, %s86
    %s104 = sphi 0, %s104
    %s106 = sphi 0, %s104
    %s107 = sphi 0, %s106
    %s121 = sphi 0, %s107
    %s129 = sphi 0, %s131
    %s132 = sphi 0, %s129
    %s133 = sphi 0, %s132
    %s149 = sphi 0, %s133
  $region4: #{mobilenet_v3_block.1} parent=0 // loop_header_branch
    %13 = sbr.rel (%p11) target = $region8
  $region5: #{mobilenet_v3_block.1} parent=0 // loop_body
    %s15 = ssub.s32 %s10, 1
    %s16 = ssub.s32 %s10, 2
    %s23 = sadd.s32 1, %s18
    %p24 = scmp.ge.s32.totalorder %s23, 2
    %s25 = scalar_select %p24, 0, %s23
    %s26 = sadd.s32 1, %s17
    %s27 = scalar_select %p24, %s26, %s17
    %p28 = scmp.ge.s32.totalorder %s27, 2
    %s29 = scalar_select %p28, 0, %s27
    %s30 = ssub.s32 1, %s17
    %s31 = smul.u32 %s18, %s30
    %s32 = sadd.s32 %s31, %s17
    %s33 = ssub.s32 1, %s29
    %s34 = smul.u32 %s25, %s33
    %s35 = sadd.s32 %s34, %s29
    %s36 = ssub.s32 %s32, %s35
    %p37 = scmp.eq.s32.totalorder %s36, 0
    %s39 = sadd.s32 %s38, 1
    %s40 = scalar_select %p37, %s38, %s39
    %p43 = pneg %p37
    %p44 = scmp.eq.s32.totalorder %s10, 3
    %p45 = por %p43, %p44
    %p46 = scmp.ne.s32.totalorder %s38, %s41
    %p47 = scmp.eq.s32.totalorder %s10, 0
    %p48 = por %p46, %p47
    %p49 = scmp.ne.s32.totalorder %s38, %s41
    %p50 = scmp.eq.s32.totalorder %s15, 3
    %p51 = por %p49, %p50
    %p52 = scmp.ne.s32.totalorder %s41, %s42
    %p53 = scmp.eq.s32.totalorder %s15, 0
    %p54 = por %p52, %p53
    %p55 = scmp.ne.s32.totalorder %s41, %s42
    %p56 = scmp.eq.s32.totalorder %s16, 3
    %p57 = por %p55, %p56
    %p59 = scmp.ne.s32.totalorder %s42, %s58
    %p60 = scmp.eq.s32.totalorder %s16, 0
    %p61 = por %p59, %p60
    %s63 = sadd.s32 %s62, 1
    %p66 = scmp.eq.s32.totalorder %s10, 3
    %p67 = scmp.ne.s32.totalorder %s62, %s64
    %p68 = scmp.eq.s32.totalorder %s10, 0
    %p69 = por %p67, %p68
    %p70 = scmp.ne.s32.totalorder %s62, %s64
    %p71 = scmp.eq.s32.totalorder %s15, 3
    %p72 = por %p70, %p71
    %p73 = scmp.ne.s32.totalorder %s64, %s65
    %p74 = scmp.eq.s32.totalorder %s15, 0
    %p75 = por %p73, %p74
    %p76 = scmp.ne.s32.totalorder %s64, %s65
    %p77 = scmp.eq.s32.totalorder %s16, 3
    %p78 = por %p76, %p77
    %p80 = scmp.ne.s32.totalorder %s65, %s79
    %p81 = scmp.eq.s32.totalorder %s16, 0
    %p82 = por %p80, %p81
    %s84 = sadd.s32 %s83, 1
    %p87 = scmp.eq.s32.totalorder %s10, 3
    %p88 = scmp.ne.s32.totalorder %s83, %s85
    %p89 = scmp.eq.s32.totalorder %s10, 0
    %p90 = por %p88, %p89
    %p91 = scmp.ne.s32.totalorder %s83, %s85
    %p92 = scmp.eq.s32.totalorder %s15, 3
    %p93 = por %p91, %p92
    %p94 = scmp.ne.s32.totalorder %s85, %s86
    %p95 = scmp.eq.s32.totalorder %s15, 0
    %p96 = por %p94, %p95
    %p97 = scmp.ne.s32.totalorder %s85, %s86
    %p98 = scmp.eq.s32.totalorder %s16, 3
    %p99 = por %p97, %p98
    %p101 = scmp.ne.s32.totalorder %s86, %s100
    %p102 = scmp.eq.s32.totalorder %s16, 0
    %p103 = por %p101, %p102
    %s105 = sadd.s32 %s104, 1
    %p108 = scmp.eq.s32.totalorder %s10, 3
    %p109 = scmp.ne.s32.totalorder %s104, %s106
    %p110 = scmp.eq.s32.totalorder %s10, 0
    %p111 = por %p109, %p110
    %p112 = scmp.ne.s32.totalorder %s104, %s106
    %p113 = scmp.eq.s32.totalorder %s15, 3
    %p114 = por %p112, %p113
    %p115 = scmp.ne.s32.totalorder %s106, %s107
    %p116 = scmp.eq.s32.totalorder %s15, 0
    %p117 = por %p115, %p116
    %p118 = scmp.ne.s32.totalorder %s106, %s107
    %p119 = scmp.eq.s32.totalorder %s16, 3
    %p120 = por %p118, %p119
    %p122 = scmp.ne.s32.totalorder %s107, %s121
    %p123 = scmp.eq.s32.totalorder %s16, 0
    %p124 = por %p122, %p123
    %s125 = smul.u32 %s18, %s17
    %s126 = smul.u32 %s25, %s29
    %s127 = ssub.s32 %s125, %s126
    %p128 = scmp.eq.s32.totalorder %s127, 0
    %s130 = sadd.s32 %s129, 1
    %s131 = scalar_select %p128, %s129, %s130
    %p134 = pneg %p128
    %p135 = scmp.eq.s32.totalorder %s10, 3
    %p136 = por %p134, %p135
    %p137 = scmp.ne.s32.totalorder %s129, %s132
    %p138 = scmp.eq.s32.totalorder %s10, 0
    %p139 = por %p137, %p138
    %p140 = scmp.ne.s32.totalorder %s129, %s132
    %p141 = scmp.eq.s32.totalorder %s15, 3
    %p142 = por %p140, %p141
    %p143 = scmp.ne.s32.totalorder %s132, %s133
    %p144 = scmp.eq.s32.totalorder %s15, 0
    %p145 = por %p143, %p144
    %p146 = scmp.ne.s32.totalorder %s132, %s133
    %p147 = scmp.eq.s32.totalorder %s16, 3
    %p148 = por %p146, %p147
    %p150 = scmp.ne.s32.totalorder %s133, %s149
    %p151 = scmp.eq.s32.totalorder %s16, 0
    %p152 = por %p150, %p151
    %p153 = scmp.le.s32.totalorder 1, %s10
    %p154 = scmp.lt.s32.totalorder %s10, 5
    %p155 = pnand %p153, %p154
    %p156 = pneg %p155
    // Predicated region
    $region9: #{mobilenet_v3_block.1} parent=5 // pred_check
      _
    $region10: #{mobilenet_v3_block.1} parent=5 // pred_check_branch
      %158 = sbr.rel (%p155) target = $region12
    $region11: #{mobilenet_v3_block.1} parent=5 // pred_region
      %s159 = ssub.s32 %s10, 1
      // Predicated region
      $region13: #{mobilenet_v3_block.1} parent=11 // pred_check
        %p160 = pneg %p75
      $region14: #{mobilenet_v3_block.1} parent=11 // pred_check_branch
        %162 = sbr.rel (%p160) target = $region16
      $region15: #{mobilenet_v3_block.1} parent=11 // pred_region
        _
      $region16: #{mobilenet_v3_block.1} parent=11 // pred_fallthru
        _
      // Predicated region
      $region17: #{mobilenet_v3_block.1} parent=11 // pred_check
        %p163 = pneg %p96
      $region18: #{mobilenet_v3_block.1} parent=11 // pred_check_branch
        %165 = sbr.rel (%p163) target = $region20
      $region19: #{mobilenet_v3_block.1} parent=11 // pred_region
        _
      $region20: #{mobilenet_v3_block.1} parent=11 // pred_fallthru
        _
      // Predicated region
      $region21: #{mobilenet_v3_block.1} parent=11 // pred_check
        %p166 = pneg %p117
      $region22: #{mobilenet_v3_block.1} parent=11 // pred_check_branch
        %168 = sbr.rel (%p166) target = $region24
      $region23: #{mobilenet_v3_block.1} parent=11 // pred_region
        _
      $region24: #{mobilenet_v3_block.1} parent=11 // pred_fallthru
        _
    $region12: #{mobilenet_v3_block.1} parent=5 // pred_fallthru
      _
    %p169 = scmp.lt.s32.totalorder %s10, 4
    // Predicated region
    $region25: #{mobilenet_v3_block.1} parent=5 // pred_check
      %p170 = pneg %p169
    $region26: #{mobilenet_v3_block.1} parent=5 // pred_check_branch
      %172 = sbr.rel (%p170) target = $region28
    $region27: #{mobilenet_v3_block.1} parent=5 // pred_region
      // Predicated region
      $region29: #{mobilenet_v3_block.1} parent=27 // pred_check
        %p173 = pneg %p48
      $region30: #{mobilenet_v3_block.1} parent=27 // pred_check_branch
        %175 = sbr.rel (%p173) target = $region32
      $region31: #{mobilenet_v3_block.1} parent=27 // pred_region
        %s176 = ssub.s32 1, %s17
        %s177 = smul.u32 %s18, %s176
        %s178 = sadd.s32 %s177, %s17
        %p179 = scmp.lt.s32.totalorder %s178, 1
        %s180 = scalar_select %p179, %s178, 1
        %s181 = smul.addr %s180, 54
        %s182 = smul.addr %s181, 4
        %s183 = scalar_lea.vmem %s0, %s182
        %s184 = ssub.s32 1, %s17
        %s185 = smul.u32 %s18, %s184
        %s186 = sadd.s32 %s185, %s17
      $region32: #{mobilenet_v3_block.1} parent=27 // pred_fallthru
        _
    $region28: #{mobilenet_v3_block.1} parent=5 // pred_fallthru
      _
    %p187 = scmp.le.s32.totalorder 1, %s10
    %p188 = scmp.lt.s32.totalorder %s10, 5
    %p189 = pnand %p187, %p188
    %p190 = pneg %p189
    // Predicated region
    $region33: #{mobilenet_v3_block.1} parent=5 // pred_check
      _
    $region34: #{mobilenet_v3_block.1} parent=5 // pred_check_branch
      %192 = sbr.rel (%p189) target = $region36
    $region35: #{mobilenet_v3_block.1} parent=5 // pred_region
      %s193 = ssub.s32 %s10, 1
      %s194 = ssub.s32 1, %s19
      %s195 = smul.u32 %s20, %s194
      %s196 = sadd.s32 %s195, %s19
      %p197 = scmp.lt.s32.totalorder %s196, 1
      %s198 = scalar_select %p197, %s196, 1
      %s199 = smul.addr %s198, 54
      %s200 = smul.addr %s199, 4
      %s201 = scalar_lea.vmem %s0, %s200
      %p202 = pneg %p54
      %p203 = pneg %p51
      %p204 = pneg %p75
      %p205 = pneg %p72
      %p206 = pneg %p96
      %p207 = pneg %p93
      %p208 = pneg %p117
      %p209 = pneg %p114
      %p210 = pneg %p145
      %p211 = pneg %p142
      %s212 = smul.u32 %s20, %s19
      %p213 = scmp.lt.s32.totalorder %s212, 1
      %s214 = scalar_select %p213, %s212, 1
      %s215 = smul.addr %s214, 32
      %s216 = smul.addr %s215, 8
      %s217 = scalar_lea.vmem %s4, %s216
      %s218 = ssub.s32 1, %s19
      %s219 = smul.u32 %s20, %s218
      %s220 = sadd.s32 %s219, %s19
      %p221 = scmp.lt.s32.totalorder %s220, 1
      %s222 = scalar_select %p221, %s220, 1
      %s223 = smul.addr %s222, 54
      %s224 = smul.addr %s223, 4
      %s225 = scalar_lea.vmem %s0, %s224
      %s226 = ssub.s32 1, %s19
      %s227 = smul.u32 %s20, %s226
      %s228 = sadd.s32 %s227, %s19
      %s229 = smul.u32 %s20, %s19
      %p230 = scmp.lt.s32.totalorder %s229, 1
      %s231 = scalar_select %p230, %s229, 1
      %s232 = smul.addr %s231, 32
      %s233 = smul.addr %s232, 8
      %s234 = scalar_lea.vmem %s4, %s233
      %s235 = smul.u32 %s20, %s19
      %p237 = scmp.eq.s32.totalorder %s19, 0
      %p238 = scmp.eq.s32.totalorder %s20, 0
      %p239 = pnand %p237, %p238
      %p240 = pneg %p239
      // Predicated region
      $region37: #{mobilenet_v3_block.1} parent=35 // pred_check
        _
      $region38: #{mobilenet_v3_block.1} parent=35 // pred_check_branch
        %242 = sbr.rel (%p239) target = $region40
      $region39: #{mobilenet_v3_block.1} parent=35 // pred_region
        %243 = vst [vmem:[#allocation3] sm:$0x1] 0.0
        %244 = vst [vmem:[#allocation4] sm:$0x1] 0.0
        %245 = vst [vmem:[%s234] sm:$0xff] 0.0
        %246 = vst [vmem:[%s234 + $0x8] sm:$0xff] 0.0
        %247 = vst [vmem:[%s234 + $0x10] sm:$0xff] 0.0
        %248 = vst [vmem:[%s234 + $0x18] sm:$0xff] 0.0
        %249 = vst [vmem:[%s234 + $0x20] sm:$0xff] 0.0
        %250 = vst [vmem:[%s234 + $0x28] sm:$0xff] 0.0
        %251 = vst [vmem:[%s234 + $0x30] sm:$0xff] 0.0
        %252 = vst [vmem:[%s234 + $0x38] sm:$0xff] 0.0
        %253 = vst [vmem:[%s234 + $0x40] sm:$0xff] 0.0
        %254 = vst [vmem:[%s234 + $0x48] sm:$0xff] 0.0
        %255 = vst [vmem:[%s234 + $0x50] sm:$0xff] 0.0
        %256 = vst [vmem:[%s234 + $0x58] sm:$0xff] 0.0
        %257 = vst [vmem:[%s234 + $0x60] sm:$0xff] 0.0
        %258 = vst [vmem:[%s234 + $0x68] sm:$0xff] 0.0
        %259 = vst [vmem:[%s234 + $0x70] sm:$0xff] 0.0
        %260 = vst [vmem:[%s234 + $0x78] sm:$0xff] 0.0
        %261 = vst [vmem:[%s234 + $0x80] sm:$0xff] 0.0
        %262 = vst [vmem:[%s234 + $0x88] sm:$0xff] 0.0
        %263 = vst [vmem:[%s234 + $0x90] sm:$0xff] 0.0
        %264 = vst [vmem:[%s234 + $0x98] sm:$0xff] 0.0
        %265 = vst [vmem:[%s234 + $0xa0] sm:$0xff] 0.0
        %266 = vst [vmem:[%s234 + $0xa8] sm:$0xff] 0.0
        %267 = vst [vmem:[%s234 + $0xb0] sm:$0xff] 0.0
        %268 = vst [vmem:[%s234 + $0xb8] sm:$0xff] 0.0
        %269 = vst [vmem:[%s234 + $0xc0] sm:$0xff] 0.0
        %270 = vst [vmem:[%s234 + $0xc8] sm:$0xff] 0.0
        %271 = vst [vmem:[%s234 + $0xd0] sm:$0xff] 0.0
        %272 = vst [vmem:[%s234 + $0xd8] sm:$0xff] 0.0
        %273 = vst [vmem:[%s234 + $0xe0] sm:$0xff] 0.0
        %274 = vst [vmem:[%s234 + $0xe8] sm:$0xff] 0.0
        %275 = vst [vmem:[%s234 + $0xf0] sm:$0xff] 0.0
        %276 = vst [vmem:[%s234 + $0xf8] sm:$0xff] 0.0
      $region40: #{mobilenet_v3_block.1} parent=35 // pred_fallthru
        _
      // Predicated region
      $region41: #{mobilenet_v3_block.1} parent=35 // pred_check
        %p277 = pneg %p237
      $region42: #{mobilenet_v3_block.1} parent=35 // pred_check_branch
        %279 = sbr.rel (%p277) target = $region44
      $region43: #{mobilenet_v3_block.1} parent=35 // pred_region
        %v280 = vld [vmem:[%s225] sm:$0xf]
        %v281 = vld [vmem:[%s225 + $0x4] sm:$0xf]
        %v282 = vld [vmem:[%s225 + $0x8] sm:$0x1]
        %v283 = vld [vmem:[%s225 + $0xc] sm:$0xf]
        %v284 = vld [vmem:[%s225 + $0x10] sm:$0xf]
        %v285 = vld [vmem:[%s225 + $0x14] sm:$0x1]
        %v286 = vld [vmem:[%s225 + $0x18] sm:$0xf]
        %v287 = vld [vmem:[%s225 + $0x1c] sm:$0xf]
        %v288 = vld [vmem:[%s225 + $0x20] sm:$0x1]
        %v289 = vld [vmem:[%s225 + $0x24] sm:$0xf]
        %v290 = vld [vmem:[%s225 + $0x28] sm:$0xf]
        %v291 = vld [vmem:[%s225 + $0x2c] sm:$0x1]
        %v292 = vld [vmem:[%s225 + $0x30] sm:$0xf]
        %v293 = vld [vmem:[%s225 + $0x34] sm:$0xf]
        %v294 = vld [vmem:[%s225 + $0x38] sm:$0x1]
        %v295 = vld [vmem:[%s225 + $0x3c] sm:$0xf]
        %v296 = vld [vmem:[%s225 + $0x40] sm:$0xf]
        %v297 = vld [vmem:[%s225 + $0x44] sm:$0x1]
        %v298 = vld [vmem:[%s225 + $0x48] sm:$0xf]
        %v299 = vld [vmem:[%s225 + $0x4c] sm:$0xf]
        %v300 = vld [vmem:[%s225 + $0x50] sm:$0x1]
        %v301 = vld [vmem:[%s225 + $0x54] sm:$0xf]
        %v302 = vld [vmem:[%s225 + $0x58] sm:$0xf]
        %v303 = vld [vmem:[%s225 + $0x5c] sm:$0x1]
        %v304 = vld [vmem:[%s225 + $0x60] sm:$0xf]
        %v305 = vld [vmem:[%s225 + $0x64] sm:$0xf]
        %v306 = vld [vmem:[%s225 + $0x68] sm:$0x1]
        %v307 = vld [vmem:[%s225 + $0x6c] sm:$0xf]
        %v308 = vld [vmem:[%s225 + $0x70] sm:$0xf]
        %v309 = vld [vmem:[%s225 + $0x74] sm:$0x1]
        %v310 = vld [vmem:[%s225 + $0x78] sm:$0xf]
        %v311 = vld [vmem:[%s225 + $0x7c] sm:$0xf]
        %v312 = vld [vmem:[%s225 + $0x80] sm:$0x1]
        %v313 = vld [vmem:[%s225 + $0x84] sm:$0xf]
        %v314 = vld [vmem:[%s225 + $0x88] sm:$0xf]
        %v315 = vld [vmem:[%s225 + $0x8c] sm:$0x1]
        %v316 = vld [vmem:[%s225 + $0x90] sm:$0xf]
        %v317 = vld [vmem:[%s225 + $0x94] sm:$0xf]
        %v318 = vld [vmem:[%s225 + $0x98] sm:$0x1]
        %v319 = vld [vmem:[%s225 + $0x9c] sm:$0xf]
        %v320 = vld [vmem:[%s225 + $0xa0] sm:$0xf]
        %v321 = vld [vmem:[%s225 + $0xa4] sm:$0x1]
        %v322 = vld [vmem:[%s225 + $0xa8] sm:$0xf]
        %v323 = vld [vmem:[%s225 + $0xac] sm:$0xf]
        %v324 = vld [vmem:[%s225 + $0xb0] sm:$0x1]
        %v325 = vld [vmem:[%s225 + $0xb4] sm:$0xf]
        %v326 = vld [vmem:[%s225 + $0xb8] sm:$0xf]
        %v327 = vld [vmem:[%s225 + $0xbc] sm:$0x1]
        %v328 = vld [vmem:[%s225 + $0xc0] sm:$0xf]
        %v329 = vld [vmem:[%s225 + $0xc4] sm:$0xf]
        %v330 = vld [vmem:[%s225 + $0xc8] sm:$0x1]
        %v331 = vld [vmem:[%s225 + $0xcc] sm:$0xf]
        %v332 = vld [vmem:[%s225 + $0xd0] sm:$0xf]
        %v333 = vld [vmem:[%s225 + $0xd4] sm:$0x1]
        %v334 = vld [vmem:[%s1] sm:$0x3]
        %vm335 = vsmask.f32 3328
        %vm336 = vsmask.f32 7440
        %vm337 = vmor %vm335, %vm336
        %v339 = vshrl.u32 %v280, 16
        %v341 = vrot.slane %v339, 4
        %v342 = vshll.u32 %v280, 16
        %v344 = vrot.slane %v342, 5
        %v345 = vor.u32 %v341, %v344
        %v346 = vrot.slane %v345, 4
        %v348 = vshll.u32 %v281, 16
        %v350 = vrot.slane %v348, 5
        %v351 = vsel %vm337, %v346, %v350
        %v352 = vshrl.u32 %v281, 16
        %v354 = vrot.slane %v352, 4
        %v355 = vor.u32 %v354, %v350
        %v356 = vrot.slane %v355, 4
        %v358 = vshll.u32 %v282, 16
        %v360 = vrot.slane %v358, 5
        %v361 = vsel %vm337, %v356, %v360
        %v363 = vshrl.u32 %v283, 16
        %v365 = vrot.slane %v363, 4
        %v366 = vshll.u32 %v283, 16
        %v368 = vrot.slane %v366, 5
        %v369 = vor.u32 %v365, %v368
        %v370 = vrot.slane %v369, 4
        %v372 = vshll.u32 %v284, 16
        %v374 = vrot.slane %v372, 5
        %v375 = vsel %vm337, %v370, %v374
        %v376 = vshrl.u32 %v284, 16
        %v378 = vrot.slane %v376, 4
        %v379 = vor.u32 %v378, %v374
        %v380 = vrot.slane %v379, 4
        %v382 = vshll.u32 %v285, 16
        %v384 = vrot.slane %v382, 5
        %v385 = vsel %vm337, %v380, %v384
        %v387 = vshrl.u32 %v286, 16
        %v389 = vrot.slane %v387, 4
        %v390 = vshll.u32 %v286, 16
        %v392 = vrot.slane %v390, 5
        %v393 = vor.u32 %v389, %v392
        %v394 = vrot.slane %v393, 4
        %v396 = vshll.u32 %v287, 16
        %v398 = vrot.slane %v396, 5
        %v399 = vsel %vm337, %v394, %v398
        %v400 = vshrl.u32 %v287, 16
        %v402 = vrot.slane %v400, 4
        %v403 = vor.u32 %v402, %v398
        %v404 = vrot.slane %v403, 4
        %v406 = vshll.u32 %v288, 16
        %v408 = vrot.slane %v406, 5
        %v409 = vsel %vm337, %v404, %v408
        %v411 = vshrl.u32 %v289, 16
        %v413 = vrot.slane %v411, 4
        %v414 = vshll.u32 %v289, 16
        %v416 = vrot.slane %v414, 5
        %v417 = vor.u32 %v413, %v416
        %v418 = vrot.slane %v417, 4
        %v420 = vshll.u32 %v290, 16
        %v422 = vrot.slane %v420, 5
        %v423 = vsel %vm337, %v418, %v422
        %v424 = vshrl.u32 %v290, 16
        %v426 = vrot.slane %v424, 4
        %v427 = vor.u32 %v426, %v422
        %v428 = vrot.slane %v427, 4
        %v430 = vshll.u32 %v291, 16
        %v432 = vrot.slane %v430, 5
        %v433 = vsel %vm337, %v428, %v432
        %v435 = vshrl.u32 %v292, 16
        %v437 = vrot.slane %v435, 4
        %v438 = vshll.u32 %v292, 16
        %v440 = vrot.slane %v438, 5
        %v441 = vor.u32 %v437, %v440
        %v442 = vrot.slane %v441, 4
        %v444 = vshll.u32 %v293, 16
        %v446 = vrot.slane %v444, 5
        %v447 = vsel %vm337, %v442, %v446
        %v448 = vshrl.u32 %v293, 16
        %v450 = vrot.slane %v448, 4
        %v451 = vor.u32 %v450, %v446
        %v452 = vrot.slane %v451, 4
        %v454 = vshll.u32 %v294, 16
        %v456 = vrot.slane %v454, 5
        %v457 = vsel %vm337, %v452, %v456
        %v459 = vshrl.u32 %v295, 16
        %v461 = vrot.slane %v459, 4
        %v462 = vshll.u32 %v295, 16
        %v464 = vrot.slane %v462, 5
        %v465 = vor.u32 %v461, %v464
        %v466 = vrot.slane %v465, 4
        %v468 = vshll.u32 %v296, 16
        %v470 = vrot.slane %v468, 5
        %v471 = vsel %vm337, %v466, %v470
        %v472 = vshrl.u32 %v296, 16
        %v474 = vrot.slane %v472, 4
        %v475 = vor.u32 %v474, %v470
        %v476 = vrot.slane %v475, 4
        %v478 = vshll.u32 %v297, 16
        %v480 = vrot.slane %v478, 5
        %v481 = vsel %vm337, %v476, %v480
        %v483 = vshrl.u32 %v298, 16
        %v485 = vrot.slane %v483, 4
        %v486 = vshll.u32 %v298, 16
        %v488 = vrot.slane %v486, 5
        %v489 = vor.u32 %v485, %v488
        %v490 = vrot.slane %v489, 4
        %v492 = vshll.u32 %v299, 16
        %v494 = vrot.slane %v492, 5
        %v495 = vsel %vm337, %v490, %v494
        %v496 = vshrl.u32 %v299, 16
        %v498 = vrot.slane %v496, 4
        %v499 = vor.u32 %v498, %v494
        %v500 = vrot.slane %v499, 4
        %v502 = vshll.u32 %v300, 16
        %v504 = vrot.slane %v502, 5
        %v505 = vsel %vm337, %v500, %v504
        %v507 = vshrl.u32 %v301, 16
        %v509 = vrot.slane %v507, 4
        %v510 = vshll.u32 %v301, 16
        %v512 = vrot.slane %v510, 5
        %v513 = vor.u32 %v509, %v512
        %v514 = vrot.slane %v513, 4
        %v516 = vshll.u32 %v302, 16
        %v518 = vrot.slane %v516, 5
        %v519 = vsel %vm337, %v514, %v518
        %v520 = vshrl.u32 %v302, 16
        %v522 = vrot.slane %v520, 4
        %v523 = vor.u32 %v522, %v518
        %v524 = vrot.slane %v523, 4
        %v526 = vshll.u32 %v303, 16
        %v528 = vrot.slane %v526, 5
        %v529 = vsel %vm337, %v524, %v528
        %v531 = vshrl.u32 %v304, 16
        %v533 = vrot.slane %v531, 4
        %v534 = vshll.u32 %v304, 16
        %v536 = vrot.slane %v534, 5
        %v537 = vor.u32 %v533, %v536
        %v538 = vrot.slane %v537, 4
        %v540 = vshll.u32 %v305, 16
        %v542 = vrot.slane %v540, 5
        %v543 = vsel %vm337, %v538, %v542
        %v544 = vshrl.u32 %v305, 16
        %v546 = vrot.slane %v544, 4
        %v547 = vor.u32 %v546, %v542
        %v548 = vrot.slane %v547, 4
        %v550 = vshll.u32 %v306, 16
        %v552 = vrot.slane %v550, 5
        %v553 = vsel %vm337, %v548, %v552
        %v555 = vshrl.u32 %v307, 16
        %v557 = vrot.slane %v555, 4
        %v558 = vshll.u32 %v307, 16
        %v560 = vrot.slane %v558, 5
        %v561 = vor.u32 %v557, %v560
        %v562 = vrot.slane %v561, 4
        %v564 = vshll.u32 %v308, 16
        %v566 = vrot.slane %v564, 5
        %v567 = vsel %vm337, %v562, %v566
        %v568 = vshrl.u32 %v308, 16
        %v570 = vrot.slane %v568, 4
        %v571 = vor.u32 %v570, %v566
        %v572 = vrot.slane %v571, 4
        %v574 = vshll.u32 %v309, 16
        %v576 = vrot.slane %v574, 5
        %v577 = vsel %vm337, %v572, %v576
        %v579 = vshrl.u32 %v310, 16
        %v581 = vrot.slane %v579, 4
        %v582 = vshll.u32 %v310, 16
        %v584 = vrot.slane %v582, 5
        %v585 = vor.u32 %v581, %v584
        %v586 = vrot.slane %v585, 4
        %v588 = vshll.u32 %v311, 16
        %v590 = vrot.slane %v588, 5
        %v591 = vsel %vm337, %v586, %v590
        %v592 = vshrl.u32 %v311, 16
        %v594 = vrot.slane %v592, 4
        %v595 = vor.u32 %v594, %v590
        %v596 = vrot.slane %v595, 4
        %v598 = vshll.u32 %v312, 16
        %v600 = vrot.slane %v598, 5
        %v601 = vsel %vm337, %v596, %v600
        %v603 = vshrl.u32 %v313, 16
        %v605 = vrot.slane %v603, 4
        %v606 = vshll.u32 %v313, 16
        %v608 = vrot.slane %v606, 5
        %v609 = vor.u32 %v605, %v608
        %v610 = vrot.slane %v609, 4
        %v612 = vshll.u32 %v314, 16
        %v614 = vrot.slane %v612, 5
        %v615 = vsel %vm337, %v610, %v614
        %v616 = vshrl.u32 %v314, 16
        %v618 = vrot.slane %v616, 4
        %v619 = vor.u32 %v618, %v614
        %v620 = vrot.slane %v619, 4
        %v622 = vshll.u32 %v315, 16
        %v624 = vrot.slane %v622, 5
        %v625 = vsel %vm337, %v620, %v624
        %v627 = vshrl.u32 %v316, 16
        %v629 = vrot.slane %v627, 4
        %v630 = vshll.u32 %v316, 16
        %v632 = vrot.slane %v630, 5
        %v633 = vor.u32 %v629, %v632
        %v634 = vrot.slane %v633, 4
        %v636 = vshll.u32 %v317, 16
        %v638 = vrot.slane %v636, 5
        %v639 = vsel %vm337, %v634, %v638
        %v640 = vshrl.u32 %v317, 16
        %v642 = vrot.slane %v640, 4
        %v643 = vor.u32 %v642, %v638
        %v644 = vrot.slane %v643, 4
        %v646 = vshll.u32 %v318, 16
        %v648 = vrot.slane %v646, 5
        %v649 = vsel %vm337, %v644, %v648
        %v651 = vshrl.u32 %v319, 16
        %v653 = vrot.slane %v651, 4
        %v654 = vshll.u32 %v319, 16
        %v656 = vrot.slane %v654, 5
        %v657 = vor.u32 %v653, %v656
        %v658 = vrot.slane %v657, 4
        %v660 = vshll.u32 %v320, 16
        %v662 = vrot.slane %v660, 5
        %v663 = vsel %vm337, %v658, %v662
        %v664 = vshrl.u32 %v320, 16
        %v666 = vrot.slane %v664, 4
        %v667 = vor.u32 %v666, %v662
        %v668 = vrot.slane %v667, 4
        %v670 = vshll.u32 %v321, 16
        %v672 = vrot.slane %v670, 5
        %v673 = vsel %vm337, %v668, %v672
        %v675 = vshrl.u32 %v322, 16
        %v677 = vrot.slane %v675, 4
        %v678 = vshll.u32 %v322, 16
        %v680 = vrot.slane %v678, 5
        %v681 = vor.u32 %v677, %v680
        %v682 = vrot.slane %v681, 4
        %v684 = vshll.u32 %v323, 16
        %v686 = vrot.slane %v684, 5
        %v687 = vsel %vm337, %v682, %v686
        %v688 = vshrl.u32 %v323, 16
        %v690 = vrot.slane %v688, 4
        %v691 = vor.u32 %v690, %v686
        %v692 = vrot.slane %v691, 4
        %v694 = vshll.u32 %v324, 16
        %v696 = vrot.slane %v694, 5
        %v697 = vsel %vm337, %v692, %v696
        %v699 = vshrl.u32 %v325, 16
        %v701 = vrot.slane %v699, 4
        %v702 = vshll.u32 %v325, 16
        %v704 = vrot.slane %v702, 5
        %v705 = vor.u32 %v701, %v704
        %v706 = vrot.slane %v705, 4
        %v708 = vshll.u32 %v326, 16
        %v710 = vrot.slane %v708, 5
        %v711 = vsel %vm337, %v706, %v710
        %v712 = vshrl.u32 %v326, 16
        %v714 = vrot.slane %v712, 4
        %v715 = vor.u32 %v714, %v710
        %v716 = vrot.slane %v715, 4
        %v718 = vshll.u32 %v327, 16
        %v720 = vrot.slane %v718, 5
        %v721 = vsel %vm337, %v716, %v720
        %s722 = scalar_lea.vmem %s1, 2
        %v723 = vld [vmem:[%s722] sm:$0x3]
        %v724 = vunpack.c.l.b16 %v351
        %v725 = vunpack.c.l.b16 %v361
        %v726 = vunpack.c.l.b16 %v375
        %v727 = vunpack.c.l.b16 %v385
        %v728 = vunpack.c.l.b16 %v399
        %v729 = vunpack.c.l.b16 %v409
        %v730 = vunpack.c.l.b16 %v423
        %v731 = vunpack.c.l.b16 %v433
        %v732 = vunpack.c.l.b16 %v447
        %v733 = vunpack.c.l.b16 %v457
        %v734 = vunpack.c.l.b16 %v471
        %v735 = vunpack.c.l.b16 %v481
        %v736 = vunpack.c.l.b16 %v495
        %v737 = vunpack.c.l.b16 %v505
        %v738 = vunpack.c.l.b16 %v519
        %v739 = vunpack.c.l.b16 %v529
        %v740 = vunpack.c.l.b16 %v543
        %v741 = vunpack.c.l.b16 %v553
        %v742 = vunpack.c.l.b16 %v567
        %v743 = vunpack.c.l.b16 %v577
        %v744 = vunpack.c.l.b16 %v591
        %v745 = vunpack.c.l.b16 %v601
        %v746 = vunpack.c.l.b16 %v615
        %v747 = vunpack.c.l.b16 %v625
        %v748 = vunpack.c.l.b16 %v639
        %v749 = vunpack.c.l.b16 %v649
        %v750 = vunpack.c.l.b16 %v663
        %v751 = vunpack.c.l.b16 %v673
        %v752 = vunpack.c.l.b16 %v687
        %v753 = vunpack.c.l.b16 %v697
        %v754 = vunpack.c.l.b16 %v711
        %v755 = vunpack.c.l.b16 %v721
        %v756 = vpack.c.b16 %v725, %v724
        %v757 = vpack.c.b16 %v727, %v726
        %v758 = vpack.c.b16 %v729, %v728
        %v759 = vpack.c.b16 %v731, %v730
        %v760 = vpack.c.b16 %v733, %v732
        %v761 = vpack.c.b16 %v735, %v734
        %v762 = vpack.c.b16 %v737, %v736
        %v763 = vpack.c.b16 %v739, %v738
        %v764 = vpack.c.b16 %v741, %v740
        %v765 = vpack.c.b16 %v743, %v742
        %v766 = vpack.c.b16 %v745, %v744
        %v767 = vpack.c.b16 %v747, %v746
        %v768 = vpack.c.b16 %v749, %v748
        %v769 = vpack.c.b16 %v751, %v750
        %v770 = vpack.c.b16 %v753, %v752
        %v771 = vpack.c.b16 %v755, %v754
        %vm772 = vcmask 31744
        %v774 = vsel %vm772, %v756, 0
        %v777 = vsel %vm772, %v757, 0
        %v780 = vsel %vm772, %v758, 0
        %v783 = vsel %vm772, %v759, 0
        %v786 = vsel %vm772, %v760, 0
        %v789 = vsel %vm772, %v761, 0
        %v792 = vsel %vm772, %v762, 0
        %v795 = vsel %vm772, %v763, 0
        %v798 = vsel %vm772, %v764, 0
        %v801 = vsel %vm772, %v765, 0
        %v804 = vsel %vm772, %v766, 0
        %v807 = vsel %vm772, %v767, 0
        %v810 = vsel %vm772, %v768, 0
        %v813 = vsel %vm772, %v769, 0
        %v816 = vsel %vm772, %v770, 0
        %v819 = vsel %vm772, %v771, 0
        %vm821 = vcmask 1041408
        %v823 = vsel %vm821, %v723, 0
        %825 = vmatpush.bf16.msra.mxu0 0
        %826 = vmatpush.bf16.msra.mxu0 0
        %827 = vmatpush.bf16.msra.mxu0 0
        %828 = vmatpush.bf16.msra.mxu0 0
        %829 = vmatpush.bf16.msra.mxu0 0
        %830 = vmatpush.bf16.msra.mxu0 0
        %831 = vmatpush.bf16.msra.mxu0 0
        %832 = vmatpush.bf16.msra.mxu0 %v823
        %833 = vmatmul.bf16.gmra.mxu0 %v774
        %v834 = vpop.f32.mrf.mxu0
        %v835 = vadd.f32 0.0, %v834
        %v836 = vpop.f32.mrf.mxu0
        %v837 = vadd.f32 0.0, %v836
        %838 = vmatmul.bf16.gmra.mxu0 %v777
        %v839 = vpop.f32.mrf.mxu0
        %v840 = vadd.f32 0.0, %v839
        %v841 = vpop.f32.mrf.mxu0
        %v842 = vadd.f32 0.0, %v841
        %843 = vmatmul.bf16.gmra.mxu0 %v780
        %v844 = vpop.f32.mrf.mxu0
        %v845 = vadd.f32 0.0, %v844
        %v846 = vpop.f32.mrf.mxu0
        %v847 = vadd.f32 0.0, %v846
        %848 = vmatmul.bf16.gmra.mxu0 %v783
        %v849 = vpop.f32.mrf.mxu0
        %v850 = vadd.f32 0.0, %v849
        %v851 = vpop.f32.mrf.mxu0
        %v852 = vadd.f32 0.0, %v851
        %853 = vmatmul.bf16.gmra.mxu0 %v786
        %v854 = vpop.f32.mrf.mxu0
        %v855 = vadd.f32 0.0, %v854
        %v856 = vpop.f32.mrf.mxu0
        %v857 = vadd.f32 0.0, %v856
        %858 = vmatmul.bf16.gmra.mxu0 %v789
        %v859 = vpop.f32.mrf.mxu0
        %v860 = vadd.f32 0.0, %v859
        %v861 = vpop.f32.mrf.mxu0
        %v862 = vadd.f32 0.0, %v861
        %863 = vmatmul.bf16.gmra.mxu0 %v792
        %v864 = vpop.f32.mrf.mxu0
        %v865 = vadd.f32 0.0, %v864
        %v866 = vpop.f32.mrf.mxu0
        %v867 = vadd.f32 0.0, %v866
        %868 = vmatmul.bf16.gmra.mxu0 %v795
        %v869 = vpop.f32.mrf.mxu0
        %v870 = vadd.f32 0.0, %v869
        %v871 = vpop.f32.mrf.mxu0
        %v872 = vadd.f32 0.0, %v871
        %873 = vmatmul.bf16.gmra.mxu0 %v798
        %v874 = vpop.f32.mrf.mxu0
        %v875 = vadd.f32 0.0, %v874
        %v876 = vpop.f32.mrf.mxu0
        %v877 = vadd.f32 0.0, %v876
        %878 = vmatmul.bf16.gmra.mxu0 %v801
        %v879 = vpop.f32.mrf.mxu0
        %v880 = vadd.f32 0.0, %v879
        %v881 = vpop.f32.mrf.mxu0
        %v882 = vadd.f32 0.0, %v881
        %883 = vmatmul.bf16.gmra.mxu0 %v804
        %v884 = vpop.f32.mrf.mxu0
        %v885 = vadd.f32 0.0, %v884
        %v886 = vpop.f32.mrf.mxu0
        %v887 = vadd.f32 0.0, %v886
        %888 = vmatmul.bf16.gmra.mxu0 %v807
        %v889 = vpop.f32.mrf.mxu0
        %v890 = vadd.f32 0.0, %v889
        %v891 = vpop.f32.mrf.mxu0
        %v892 = vadd.f32 0.0, %v891
        %893 = vmatmul.bf16.gmra.mxu0 %v810
        %v894 = vpop.f32.mrf.mxu0
        %v895 = vadd.f32 0.0, %v894
        %v896 = vpop.f32.mrf.mxu0
        %v897 = vadd.f32 0.0, %v896
        %898 = vmatmul.bf16.gmra.mxu0 %v813
        %v899 = vpop.f32.mrf.mxu0
        %v900 = vadd.f32 0.0, %v899
        %v901 = vpop.f32.mrf.mxu0
        %v902 = vadd.f32 0.0, %v901
        %903 = vmatmul.bf16.gmra.mxu0 %v816
        %v904 = vpop.f32.mrf.mxu0
        %v905 = vadd.f32 0.0, %v904
        %v906 = vpop.f32.mrf.mxu0
        %v907 = vadd.f32 0.0, %v906
        %908 = vmatmul.bf16.gmra.mxu0 %v819
        %v909 = vpop.f32.mrf.mxu0
        %v910 = vadd.f32 0.0, %v909
        %v911 = vpop.f32.mrf.mxu0
        %v912 = vadd.f32 0.0, %v911
        %913 = vdwg.mxu0
        %v946 = vunpack.c.l.b16 %v280
        %v947 = vunpack.c.l.b16 %v281
        %v948 = vunpack.c.l.b16 %v283
        %v949 = vunpack.c.l.b16 %v284
        %v950 = vunpack.c.l.b16 %v286
        %v951 = vunpack.c.l.b16 %v287
        %v952 = vunpack.c.l.b16 %v289
        %v953 = vunpack.c.l.b16 %v290
        %v954 = vunpack.c.l.b16 %v292
        %v955 = vunpack.c.l.b16 %v293
        %v956 = vunpack.c.l.b16 %v295
        %v957 = vunpack.c.l.b16 %v296
        %v958 = vunpack.c.l.b16 %v298
        %v959 = vunpack.c.l.b16 %v299
        %v960 = vunpack.c.l.b16 %v301
        %v961 = vunpack.c.l.b16 %v302
        %v962 = vunpack.c.l.b16 %v304
        %v963 = vunpack.c.l.b16 %v305
        %v964 = vunpack.c.l.b16 %v307
        %v965 = vunpack.c.l.b16 %v308
        %v966 = vunpack.c.l.b16 %v310
        %v967 = vunpack.c.l.b16 %v311
        %v968 = vunpack.c.l.b16 %v313
        %v969 = vunpack.c.l.b16 %v314
        %v970 = vunpack.c.l.b16 %v316
        %v971 = vunpack.c.l.b16 %v317
        %v972 = vunpack.c.l.b16 %v319
        %v973 = vunpack.c.l.b16 %v320
        %v974 = vunpack.c.l.b16 %v322
        %v975 = vunpack.c.l.b16 %v323
        %v976 = vunpack.c.l.b16 %v325
        %v977 = vunpack.c.l.b16 %v326
        %v978 = vpack.c.b16 %v947, %v946
        %v979 = vpack.c.b16 %v949, %v948
        %v980 = vpack.c.b16 %v951, %v950
        %v981 = vpack.c.b16 %v953, %v952
        %v982 = vpack.c.b16 %v955, %v954
        %v983 = vpack.c.b16 %v957, %v956
        %v984 = vpack.c.b16 %v959, %v958
        %v985 = vpack.c.b16 %v961, %v960
        %v986 = vpack.c.b16 %v963, %v962
        %v987 = vpack.c.b16 %v965, %v964
        %v988 = vpack.c.b16 %v967, %v966
        %v989 = vpack.c.b16 %v969, %v968
        %v990 = vpack.c.b16 %v971, %v970
        %v991 = vpack.c.b16 %v973, %v972
        %v992 = vpack.c.b16 %v975, %v974
        %v993 = vpack.c.b16 %v977, %v976
        %v995 = vsel %vm772, %v978, 0
        %v998 = vsel %vm772, %v979, 0
        %v1001 = vsel %vm772, %v980, 0
        %v1004 = vsel %vm772, %v981, 0
        %v1007 = vsel %vm772, %v982, 0
        %v1010 = vsel %vm772, %v983, 0
        %v1013 = vsel %vm772, %v984, 0
        %v1016 = vsel %vm772, %v985, 0
        %v1019 = vsel %vm772, %v986, 0
        %v1022 = vsel %vm772, %v987, 0
        %v1025 = vsel %vm772, %v988, 0
        %v1028 = vsel %vm772, %v989, 0
        %v1031 = vsel %vm772, %v990, 0
        %v1034 = vsel %vm772, %v991, 0
        %v1037 = vsel %vm772, %v992, 0
        %v1040 = vsel %vm772, %v993, 0
        %v1043 = vsel %vm821, %v334, 0
        %1045 = vmatpush.bf16.msra.mxu0 0
        %1046 = vmatpush.bf16.msra.mxu0 0
        %1047 = vmatpush.bf16.msra.mxu0 0
        %1048 = vmatpush.bf16.msra.mxu0 0
        %1049 = vmatpush.bf16.msra.mxu0 0
        %1050 = vmatpush.bf16.msra.mxu0 0
        %1051 = vmatpush.bf16.msra.mxu0 0
        %1052 = vmatpush.bf16.msra.mxu0 %v1043
        %1053 = vmatmul.bf16.gmra.mxu0 %v995
        %v1054 = vpop.f32.mrf.mxu0
        %v1055 = vadd.f32 %v835, %v1054
        %v1056 = vpop.f32.mrf.mxu0
        %v1057 = vadd.f32 %v837, %v1056
        %1058 = vmatmul.bf16.gmra.mxu0 %v998
        %v1059 = vpop.f32.mrf.mxu0
        %v1060 = vadd.f32 %v840, %v1059
        %v1061 = vpop.f32.mrf.mxu0
        %v1062 = vadd.f32 %v842, %v1061
        %1063 = vmatmul.bf16.gmra.mxu0 %v1001
        %v1064 = vpop.f32.mrf.mxu0
        %v1065 = vadd.f32 %v845, %v1064
        %v1066 = vpop.f32.mrf.mxu0
        %v1067 = vadd.f32 %v847, %v1066
        %1068 = vmatmul.bf16.gmra.mxu0 %v1004
        %v1069 = vpop.f32.mrf.mxu0
        %v1070 = vadd.f32 %v850, %v1069
        %v1071 = vpop.f32.mrf.mxu0
        %v1072 = vadd.f32 %v852, %v1071
        %1073 = vmatmul.bf16.gmra.mxu0 %v1007
        %v1074 = vpop.f32.mrf.mxu0
        %v1075 = vadd.f32 %v855, %v1074
        %v1076 = vpop.f32.mrf.mxu0
        %v1077 = vadd.f32 %v857, %v1076
        %1078 = vmatmul.bf16.gmra.mxu0 %v1010
        %v1079 = vpop.f32.mrf.mxu0
        %v1080 = vadd.f32 %v860, %v1079
        %v1081 = vpop.f32.mrf.mxu0
        %v1082 = vadd.f32 %v862, %v1081
        %1083 = vmatmul.bf16.gmra.mxu0 %v1013
        %v1084 = vpop.f32.mrf.mxu0
        %v1085 = vadd.f32 %v865, %v1084
        %v1086 = vpop.f32.mrf.mxu0
        %v1087 = vadd.f32 %v867, %v1086
        %1088 = vmatmul.bf16.gmra.mxu0 %v1016
        %v1089 = vpop.f32.mrf.mxu0
        %v1090 = vadd.f32 %v870, %v1089
        %v1091 = vpop.f32.mrf.mxu0
        %v1092 = vadd.f32 %v872, %v1091
        %1093 = vmatmul.bf16.gmra.mxu0 %v1019
        %v1094 = vpop.f32.mrf.mxu0
        %v1095 = vadd.f32 %v875, %v1094
        %v1096 = vpop.f32.mrf.mxu0
        %v1097 = vadd.f32 %v877, %v1096
        %1098 = vmatmul.bf16.gmra.mxu0 %v1022
        %v1099 = vpop.f32.mrf.mxu0
        %v1100 = vadd.f32 %v880, %v1099
        %v1101 = vpop.f32.mrf.mxu0
        %v1102 = vadd.f32 %v882, %v1101
        %1103 = vmatmul.bf16.gmra.mxu0 %v1025
        %v1104 = vpop.f32.mrf.mxu0
        %v1105 = vadd.f32 %v885, %v1104
        %v1106 = vpop.f32.mrf.mxu0
        %v1107 = vadd.f32 %v887, %v1106
        %1108 = vmatmul.bf16.gmra.mxu0 %v1028
        %v1109 = vpop.f32.mrf.mxu0
        %v1110 = vadd.f32 %v890, %v1109
        %v1111 = vpop.f32.mrf.mxu0
        %v1112 = vadd.f32 %v892, %v1111
        %1113 = vmatmul.bf16.gmra.mxu0 %v1031
        %v1114 = vpop.f32.mrf.mxu0
        %v1115 = vadd.f32 %v895, %v1114
        %v1116 = vpop.f32.mrf.mxu0
        %v1117 = vadd.f32 %v897, %v1116
        %1118 = vmatmul.bf16.gmra.mxu0 %v1034
        %v1119 = vpop.f32.mrf.mxu0
        %v1120 = vadd.f32 %v900, %v1119
        %v1121 = vpop.f32.mrf.mxu0
        %v1122 = vadd.f32 %v902, %v1121
        %1123 = vmatmul.bf16.gmra.mxu0 %v1037
        %v1124 = vpop.f32.mrf.mxu0
        %v1125 = vadd.f32 %v905, %v1124
        %v1126 = vpop.f32.mrf.mxu0
        %v1127 = vadd.f32 %v907, %v1126
        %1128 = vmatmul.bf16.gmra.mxu0 %v1040
        %v1129 = vpop.f32.mrf.mxu0
        %v1130 = vadd.f32 %v910, %v1129
        %v1131 = vpop.f32.mrf.mxu0
        %v1132 = vadd.f32 %v912, %v1131
        %1133 = vdwg.mxu0
        %vm1150 = vcmask 1042432
        %vm1151 = vcmask 1046532
        %vm1152 = vmor %vm1150, %vm1151
        %v1153 = vrot.slane %v280, 5
        %v1154 = vrot.slane %v1153, 4
        %v1155 = vrot.slane %v281, 5
        %v1156 = vsel %vm1152, %v1154, %v1155
        %v1157 = vrot.slane %v1155, 4
        %v1158 = vrot.slane %v282, 5
        %v1159 = vsel %vm1152, %v1157, %v1158
        %v1160 = vrot.slane %v283, 5
        %v1161 = vrot.slane %v1160, 4
        %v1162 = vrot.slane %v284, 5
        %v1163 = vsel %vm1152, %v1161, %v1162
        %v1164 = vrot.slane %v1162, 4
        %v1165 = vrot.slane %v285, 5
        %v1166 = vsel %vm1152, %v1164, %v1165
        %v1167 = vrot.slane %v286, 5
        %v1168 = vrot.slane %v1167, 4
        %v1169 = vrot.slane %v287, 5
        %v1170 = vsel %vm1152, %v1168, %v1169
        %v1171 = vrot.slane %v1169, 4
        %v1172 = vrot.slane %v288, 5
        %v1173 = vsel %vm1152, %v1171, %v1172
        %v1174 = vrot.slane %v289, 5
        %v1175 = vrot.slane %v1174, 4
        %v1176 = vrot.slane %v290, 5
        %v1177 = vsel %vm1152, %v1175, %v1176
        %v1178 = vrot.slane %v1176, 4
        %v1179 = vrot.slane %v291, 5
        %v1180 = vsel %vm1152, %v1178, %v1179
        %v1181 = vrot.slane %v292, 5
        %v1182 = vrot.slane %v1181, 4
        %v1183 = vrot.slane %v293, 5
        %v1184 = vsel %vm1152, %v1182, %v1183
        %v1185 = vrot.slane %v1183, 4
        %v1186 = vrot.slane %v294, 5
        %v1187 = vsel %vm1152, %v1185, %v1186
        %v1188 = vrot.slane %v295, 5
        %v1189 = vrot.slane %v1188, 4
        %v1190 = vrot.slane %v296, 5
        %v1191 = vsel %vm1152, %v1189, %v1190
        %v1192 = vrot.slane %v1190, 4
        %v1193 = vrot.slane %v297, 5
        %v1194 = vsel %vm1152, %v1192, %v1193
        %v1195 = vrot.slane %v298, 5
        %v1196 = vrot.slane %v1195, 4
        %v1197 = vrot.slane %v299, 5
        %v1198 = vsel %vm1152, %v1196, %v1197
        %v1199 = vrot.slane %v1197, 4
        %v1200 = vrot.slane %v300, 5
        %v1201 = vsel %vm1152, %v1199, %v1200
        %v1202 = vrot.slane %v301, 5
        %v1203 = vrot.slane %v1202, 4
        %v1204 = vrot.slane %v302, 5
        %v1205 = vsel %vm1152, %v1203, %v1204
        %v1206 = vrot.slane %v1204, 4
        %v1207 = vrot.slane %v303, 5
        %v1208 = vsel %vm1152, %v1206, %v1207
        %v1209 = vrot.slane %v304, 5
        %v1210 = vrot.slane %v1209, 4
        %v1211 = vrot.slane %v305, 5
        %v1212 = vsel %vm1152, %v1210, %v1211
        %v1213 = vrot.slane %v1211, 4
        %v1214 = vrot.slane %v306, 5
        %v1215 = vsel %vm1152, %v1213, %v1214
        %v1216 = vrot.slane %v307, 5
        %v1217 = vrot.slane %v1216, 4
        %v1218 = vrot.slane %v308, 5
        %v1219 = vsel %vm1152, %v1217, %v1218
        %v1220 = vrot.slane %v1218, 4
        %v1221 = vrot.slane %v309, 5
        %v1222 = vsel %vm1152, %v1220, %v1221
        %v1223 = vrot.slane %v310, 5
        %v1224 = vrot.slane %v1223, 4
        %v1225 = vrot.slane %v311, 5
        %v1226 = vsel %vm1152, %v1224, %v1225
        %v1227 = vrot.slane %v1225, 4
        %v1228 = vrot.slane %v312, 5
        %v1229 = vsel %vm1152, %v1227, %v1228
        %v1230 = vrot.slane %v313, 5
        %v1231 = vrot.slane %v1230, 4
        %v1232 = vrot.slane %v314, 5
        %v1233 = vsel %vm1152, %v1231, %v1232
        %v1234 = vrot.slane %v1232, 4
        %v1235 = vrot.slane %v315, 5
        %v1236 = vsel %vm1152, %v1234, %v1235
        %v1237 = vrot.slane %v316, 5
        %v1238 = vrot.slane %v1237, 4
        %v1239 = vrot.slane %v317, 5
        %v1240 = vsel %vm1152, %v1238, %v1239
        %v1241 = vrot.slane %v1239, 4
        %v1242 = vrot.slane %v318, 5
        %v1243 = vsel %vm1152, %v1241, %v1242
        %v1244 = vrot.slane %v319, 5
        %v1245 = vrot.slane %v1244, 4
        %v1246 = vrot.slane %v320, 5
        %v1247 = vsel %vm1152, %v1245, %v1246
        %v1248 = vrot.slane %v1246, 4
        %v1249 = vrot.slane %v321, 5
        %v1250 = vsel %vm1152, %v1248, %v1249
        %v1251 = vrot.slane %v322, 5
        %v1252 = vrot.slane %v1251, 4
        %v1253 = vrot.slane %v323, 5
        %v1254 = vsel %vm1152, %v1252, %v1253
        %v1255 = vrot.slane %v1253, 4
        %v1256 = vrot.slane %v324, 5
        %v1257 = vsel %vm1152, %v1255, %v1256
        %v1258 = vrot.slane %v325, 5
        %v1259 = vrot.slane %v1258, 4
        %v1260 = vrot.slane %v326, 5
        %v1261 = vsel %vm1152, %v1259, %v1260
        %v1262 = vrot.slane %v1260, 4
        %v1263 = vrot.slane %v327, 5
        %v1264 = vsel %vm1152, %v1262, %v1263
        %s1265 = scalar_lea.vmem %s1, 4
        %v1266 = vld [vmem:[%s1265] sm:$0x3]
        %v1267 = vunpack.c.l.b16 %v1156
        %v1268 = vunpack.c.l.b16 %v1159
        %v1269 = vunpack.c.l.b16 %v1163
        %v1270 = vunpack.c.l.b16 %v1166
        %v1271 = vunpack.c.l.b16 %v1170
        %v1272 = vunpack.c.l.b16 %v1173
        %v1273 = vunpack.c.l.b16 %v1177
        %v1274 = vunpack.c.l.b16 %v1180
        %v1275 = vunpack.c.l.b16 %v1184
        %v1276 = vunpack.c.l.b16 %v1187
        %v1277 = vunpack.c.l.b16 %v1191
        %v1278 = vunpack.c.l.b16 %v1194
        %v1279 = vunpack.c.l.b16 %v1198
        %v1280 = vunpack.c.l.b16 %v1201
        %v1281 = vunpack.c.l.b16 %v1205
        %v1282 = vunpack.c.l.b16 %v1208
        %v1283 = vunpack.c.l.b16 %v1212
        %v1284 = vunpack.c.l.b16 %v1215
        %v1285 = vunpack.c.l.b16 %v1219
        %v1286 = vunpack.c.l.b16 %v1222
        %v1287 = vunpack.c.l.b16 %v1226
        %v1288 = vunpack.c.l.b16 %v1229
        %v1289 = vunpack.c.l.b16 %v1233
        %v1290 = vunpack.c.l.b16 %v1236
        %v1291 = vunpack.c.l.b16 %v1240
        %v1292 = vunpack.c.l.b16 %v1243
        %v1293 = vunpack.c.l.b16 %v1247
        %v1294 = vunpack.c.l.b16 %v1250
        %v1295 = vunpack.c.l.b16 %v1254
        %v1296 = vunpack.c.l.b16 %v1257
        %v1297 = vunpack.c.l.b16 %v1261
        %v1298 = vunpack.c.l.b16 %v1264
        %v1299 = vpack.c.b16 %v1268, %v1267
        %v1300 = vpack.c.b16 %v1270, %v1269
        %v1301 = vpack.c.b16 %v1272, %v1271
        %v1302 = vpack.c.b16 %v1274, %v1273
        %v1303 = vpack.c.b16 %v1276, %v1275
        %v1304 = vpack.c.b16 %v1278, %v1277
        %v1305 = vpack.c.b16 %v1280, %v1279
        %v1306 = vpack.c.b16 %v1282, %v1281
        %v1307 = vpack.c.b16 %v1284, %v1283
        %v1308 = vpack.c.b16 %v1286, %v1285
        %v1309 = vpack.c.b16 %v1288, %v1287
        %v1310 = vpack.c.b16 %v1290, %v1289
        %v1311 = vpack.c.b16 %v1292, %v1291
        %v1312 = vpack.c.b16 %v1294, %v1293
        %v1313 = vpack.c.b16 %v1296, %v1295
        %v1314 = vpack.c.b16 %v1298, %v1297
        %v1316 = vsel %vm772, %v1299, 0
        %v1319 = vsel %vm772, %v1300, 0
        %v1322 = vsel %vm772, %v1301, 0
        %v1325 = vsel %vm772, %v1302, 0
        %v1328 = vsel %vm772, %v1303, 0
        %v1331 = vsel %vm772, %v1304, 0
        %v1334 = vsel %vm772, %v1305, 0
        %v1337 = vsel %vm772, %v1306, 0
        %v1340 = vsel %vm772, %v1307, 0
        %v1343 = vsel %vm772, %v1308, 0
        %v1346 = vsel %vm772, %v1309, 0
        %v1349 = vsel %vm772, %v1310, 0
        %v1352 = vsel %vm772, %v1311, 0
        %v1355 = vsel %vm772, %v1312, 0
        %v1358 = vsel %vm772, %v1313, 0
        %v1361 = vsel %vm772, %v1314, 0
        %v1364 = vsel %vm821, %v1266, 0
        %1366 = vmatpush.bf16.msra.mxu0 0
        %1367 = vmatpush.bf16.msra.mxu0 0
        %1368 = vmatpush.bf16.msra.mxu0 0
        %1369 = vmatpush.bf16.msra.mxu0 0
        %1370 = vmatpush.bf16.msra.mxu0 0
        %1371 = vmatpush.bf16.msra.mxu0 0
        %1372 = vmatpush.bf16.msra.mxu0 0
        %1373 = vmatpush.bf16.msra.mxu0 %v1364
        %1374 = vmatmul.bf16.gmra.mxu0 %v1316
        %v1375 = vpop.f32.mrf.mxu0
        %v1376 = vadd.f32 0.0, %v1375
        %v1377 = vpop.f32.mrf.mxu0
        %v1378 = vadd.f32 0.0, %v1377
        %1379 = vmatmul.bf16.gmra.mxu0 %v1319
        %v1380 = vpop.f32.mrf.mxu0
        %v1381 = vadd.f32 0.0, %v1380
        %v1382 = vpop.f32.mrf.mxu0
        %v1383 = vadd.f32 0.0, %v1382
        %1384 = vmatmul.bf16.gmra.mxu0 %v1322
        %v1385 = vpop.f32.mrf.mxu0
        %v1386 = vadd.f32 0.0, %v1385
        %v1387 = vpop.f32.mrf.mxu0
        %v1388 = vadd.f32 0.0, %v1387
        %1389 = vmatmul.bf16.gmra.mxu0 %v1325
        %v1390 = vpop.f32.mrf.mxu0
        %v1391 = vadd.f32 0.0, %v1390
        %v1392 = vpop.f32.mrf.mxu0
        %v1393 = vadd.f32 0.0, %v1392
        %1394 = vmatmul.bf16.gmra.mxu0 %v1328
        %v1395 = vpop.f32.mrf.mxu0
        %v1396 = vadd.f32 0.0, %v1395
        %v1397 = vpop.f32.mrf.mxu0
        %v1398 = vadd.f32 0.0, %v1397
        %1399 = vmatmul.bf16.gmra.mxu0 %v1331
        %v1400 = vpop.f32.mrf.mxu0
        %v1401 = vadd.f32 0.0, %v1400
        %v1402 = vpop.f32.mrf.mxu0
        %v1403 = vadd.f32 0.0, %v1402
        %1404 = vmatmul.bf16.gmra.mxu0 %v1334
        %v1405 = vpop.f32.mrf.mxu0
        %v1406 = vadd.f32 0.0, %v1405
        %v1407 = vpop.f32.mrf.mxu0
        %v1408 = vadd.f32 0.0, %v1407
        %1409 = vmatmul.bf16.gmra.mxu0 %v1337
        %v1410 = vpop.f32.mrf.mxu0
        %v1411 = vadd.f32 0.0, %v1410
        %v1412 = vpop.f32.mrf.mxu0
        %v1413 = vadd.f32 0.0, %v1412
        %1414 = vmatmul.bf16.gmra.mxu0 %v1340
        %v1415 = vpop.f32.mrf.mxu0
        %v1416 = vadd.f32 0.0, %v1415
        %v1417 = vpop.f32.mrf.mxu0
        %v1418 = vadd.f32 0.0, %v1417
        %1419 = vmatmul.bf16.gmra.mxu0 %v1343
        %v1420 = vpop.f32.mrf.mxu0
        %v1421 = vadd.f32 0.0, %v1420
        %v1422 = vpop.f32.mrf.mxu0
        %v1423 = vadd.f32 0.0, %v1422
        %1424 = vmatmul.bf16.gmra.mxu0 %v1346
        %v1425 = vpop.f32.mrf.mxu0
        %v1426 = vadd.f32 0.0, %v1425
        %v1427 = vpop.f32.mrf.mxu0
        %v1428 = vadd.f32 0.0, %v1427
        %1429 = vmatmul.bf16.gmra.mxu0 %v1349
        %v1430 = vpop.f32.mrf.mxu0
        %v1431 = vadd.f32 0.0, %v1430
        %v1432 = vpop.f32.mrf.mxu0
        %v1433 = vadd.f32 0.0, %v1432
        %1434 = vmatmul.bf16.gmra.mxu0 %v1352
        %v1435 = vpop.f32.mrf.mxu0
        %v1436 = vadd.f32 0.0, %v1435
        %v1437 = vpop.f32.mrf.mxu0
        %v1438 = vadd.f32 0.0, %v1437
        %1439 = vmatmul.bf16.gmra.mxu0 %v1355
        %v1440 = vpop.f32.mrf.mxu0
        %v1441 = vadd.f32 0.0, %v1440
        %v1442 = vpop.f32.mrf.mxu0
        %v1443 = vadd.f32 0.0, %v1442
        %1444 = vmatmul.bf16.gmra.mxu0 %v1358
        %v1445 = vpop.f32.mrf.mxu0
        %v1446 = vadd.f32 0.0, %v1445
        %v1447 = vpop.f32.mrf.mxu0
        %v1448 = vadd.f32 0.0, %v1447
        %1449 = vmatmul.bf16.gmra.mxu0 %v1361
        %v1450 = vpop.f32.mrf.mxu0
        %v1451 = vadd.f32 0.0, %v1450
        %v1452 = vpop.f32.mrf.mxu0
        %v1453 = vadd.f32 0.0, %v1452
        %1454 = vdwg.mxu0
        %v1455 = vadd.f32 %v1055, %v1376
        %v1456 = vadd.f32 %v1057, %v1378
        %v1457 = vadd.f32 %v1060, %v1381
        %v1458 = vadd.f32 %v1062, %v1383
        %v1459 = vadd.f32 %v1065, %v1386
        %v1460 = vadd.f32 %v1067, %v1388
        %v1461 = vadd.f32 %v1070, %v1391
        %v1462 = vadd.f32 %v1072, %v1393
        %v1463 = vadd.f32 %v1075, %v1396
        %v1464 = vadd.f32 %v1077, %v1398
        %v1465 = vadd.f32 %v1080, %v1401
        %v1466 = vadd.f32 %v1082, %v1403
        %v1467 = vadd.f32 %v1085, %v1406
        %v1468 = vadd.f32 %v1087, %v1408
        %v1469 = vadd.f32 %v1090, %v1411
        %v1470 = vadd.f32 %v1092, %v1413
        %v1471 = vadd.f32 %v1095, %v1416
        %v1472 = vadd.f32 %v1097, %v1418
        %v1473 = vadd.f32 %v1100, %v1421
        %v1474 = vadd.f32 %v1102, %v1423
        %v1475 = vadd.f32 %v1105, %v1426
        %v1476 = vadd.f32 %v1107, %v1428
        %v1477 = vadd.f32 %v1110, %v1431
        %v1478 = vadd.f32 %v1112, %v1433
        %v1479 = vadd.f32 %v1115, %v1436
        %v1480 = vadd.f32 %v1117, %v1438
        %v1481 = vadd.f32 %v1120, %v1441
        %v1482 = vadd.f32 %v1122, %v1443
        %v1483 = vadd.f32 %v1125, %v1446
        %v1484 = vadd.f32 %v1127, %v1448
        %v1485 = vadd.f32 %v1130, %v1451
        %v1486 = vadd.f32 %v1132, %v1453
        %s1487 = scalar_lea.vmem %s1, 6
        %v1488 = vld [vmem:[%s1487] sm:$0x3]
        %v1491 = vunpack.c.l.b16 %v328
        %v1492 = vunpack.c.l.b16 %v329
        %v1493 = vpack.c.b16 %v1492, %v1491
        %v1495 = vsel %vm772, %v1493, 0
        %v1498 = vsel %vm821, %v1488, 0
        %1500 = vmatpush.bf16.msra.mxu0 0
        %1501 = vmatpush.bf16.msra.mxu0 0
        %1502 = vmatpush.bf16.msra.mxu0 0
        %1503 = vmatpush.bf16.msra.mxu0 0
        %1504 = vmatpush.bf16.msra.mxu0 0
        %1505 = vmatpush.bf16.msra.mxu0 0
        %1506 = vmatpush.bf16.msra.mxu0 0
        %1507 = vmatpush.bf16.msra.mxu0 %v1498
        %1508 = vmatmul.bf16.gmra.mxu0 %v998
        %v1509 = vpop.f32.mrf.mxu0
        %v1510 = vadd.f32 0.0, %v1509
        %v1511 = vpop.f32.mrf.mxu0
        %v1512 = vadd.f32 0.0, %v1511
        %1513 = vmatmul.bf16.gmra.mxu0 %v1001
        %v1514 = vpop.f32.mrf.mxu0
        %v1515 = vadd.f32 0.0, %v1514
        %v1516 = vpop.f32.mrf.mxu0
        %v1517 = vadd.f32 0.0, %v1516
        %1518 = vmatmul.bf16.gmra.mxu0 %v1004
        %v1519 = vpop.f32.mrf.mxu0
        %v1520 = vadd.f32 0.0, %v1519
        %v1521 = vpop.f32.mrf.mxu0
        %v1522 = vadd.f32 0.0, %v1521
        %1523 = vmatmul.bf16.gmra.mxu0 %v1007
        %v1524 = vpop.f32.mrf.mxu0
        %v1525 = vadd.f32 0.0, %v1524
        %v1526 = vpop.f32.mrf.mxu0
        %v1527 = vadd.f32 0.0, %v1526
        %1528 = vmatmul.bf16.gmra.mxu0 %v1010
        %v1529 = vpop.f32.mrf.mxu0
        %v1530 = vadd.f32 0.0, %v1529
        %v1531 = vpop.f32.mrf.mxu0
        %v1532 = vadd.f32 0.0, %v1531
        %1533 = vmatmul.bf16.gmra.mxu0 %v1013
        %v1534 = vpop.f32.mrf.mxu0
        %v1535 = vadd.f32 0.0, %v1534
        %v1536 = vpop.f32.mrf.mxu0
        %v1537 = vadd.f32 0.0, %v1536
        %1538 = vmatmul.bf16.gmra.mxu0 %v1016
        %v1539 = vpop.f32.mrf.mxu0
        %v1540 = vadd.f32 0.0, %v1539
        %v1541 = vpop.f32.mrf.mxu0
        %v1542 = vadd.f32 0.0, %v1541
        %1543 = vmatmul.bf16.gmra.mxu0 %v1019
        %v1544 = vpop.f32.mrf.mxu0
        %v1545 = vadd.f32 0.0, %v1544
        %v1546 = vpop.f32.mrf.mxu0
        %v1547 = vadd.f32 0.0, %v1546
        %1548 = vmatmul.bf16.gmra.mxu0 %v1022
        %v1549 = vpop.f32.mrf.mxu0
        %v1550 = vadd.f32 0.0, %v1549
        %v1551 = vpop.f32.mrf.mxu0
        %v1552 = vadd.f32 0.0, %v1551
        %1553 = vmatmul.bf16.gmra.mxu0 %v1025
        %v1554 = vpop.f32.mrf.mxu0
        %v1555 = vadd.f32 0.0, %v1554
        %v1556 = vpop.f32.mrf.mxu0
        %v1557 = vadd.f32 0.0, %v1556
        %1558 = vmatmul.bf16.gmra.mxu0 %v1028
        %v1559 = vpop.f32.mrf.mxu0
        %v1560 = vadd.f32 0.0, %v1559
        %v1561 = vpop.f32.mrf.mxu0
        %v1562 = vadd.f32 0.0, %v1561
        %1563 = vmatmul.bf16.gmra.mxu0 %v1031
        %v1564 = vpop.f32.mrf.mxu0
        %v1565 = vadd.f32 0.0, %v1564
        %v1566 = vpop.f32.mrf.mxu0
        %v1567 = vadd.f32 0.0, %v1566
        %1568 = vmatmul.bf16.gmra.mxu0 %v1034
        %v1569 = vpop.f32.mrf.mxu0
        %v1570 = vadd.f32 0.0, %v1569
        %v1571 = vpop.f32.mrf.mxu0
        %v1572 = vadd.f32 0.0, %v1571
        %1573 = vmatmul.bf16.gmra.mxu0 %v1037
        %v1574 = vpop.f32.mrf.mxu0
        %v1575 = vadd.f32 0.0, %v1574
        %v1576 = vpop.f32.mrf.mxu0
        %v1577 = vadd.f32 0.0, %v1576
        %1578 = vmatmul.bf16.gmra.mxu0 %v1040
        %v1579 = vpop.f32.mrf.mxu0
        %v1580 = vadd.f32 0.0, %v1579
        %v1581 = vpop.f32.mrf.mxu0
        %v1582 = vadd.f32 0.0, %v1581
        %1583 = vmatmul.bf16.gmra.mxu0 %v1495
        %v1584 = vpop.f32.mrf.mxu0
        %v1585 = vadd.f32 0.0, %v1584
        %v1586 = vpop.f32.mrf.mxu0
        %v1587 = vadd.f32 0.0, %v1586
        %1588 = vdwg.mxu0
        %v1589 = vadd.f32 %v1455, %v1510
        %v1590 = vadd.f32 %v1456, %v1512
        %v1591 = vadd.f32 %v1457, %v1515
        %v1592 = vadd.f32 %v1458, %v1517
        %v1593 = vadd.f32 %v1459, %v1520
        %v1594 = vadd.f32 %v1460, %v1522
        %v1595 = vadd.f32 %v1461, %v1525
        %v1596 = vadd.f32 %v1462, %v1527
        %v1597 = vadd.f32 %v1463, %v1530
        %v1598 = vadd.f32 %v1464, %v1532
        %v1599 = vadd.f32 %v1465, %v1535
        %v1600 = vadd.f32 %v1466, %v1537
        %v1601 = vadd.f32 %v1467, %v1540
        %v1602 = vadd.f32 %v1468, %v1542
        %v1603 = vadd.f32 %v1469, %v1545
        %v1604 = vadd.f32 %v1470, %v1547
        %v1605 = vadd.f32 %v1471, %v1550
        %v1606 = vadd.f32 %v1472, %v1552
        %v1607 = vadd.f32 %v1473, %v1555
        %v1608 = vadd.f32 %v1474, %v1557
        %v1609 = vadd.f32 %v1475, %v1560
        %v1610 = vadd.f32 %v1476, %v1562
        %v1611 = vadd.f32 %v1477, %v1565
        %v1612 = vadd.f32 %v1478, %v1567
        %v1613 = vadd.f32 %v1479, %v1570
        %v1614 = vadd.f32 %v1480, %v1572
        %v1615 = vadd.f32 %v1481, %v1575
        %v1616 = vadd.f32 %v1482, %v1577
        %v1617 = vadd.f32 %v1483, %v1580
        %v1618 = vadd.f32 %v1484, %v1582
        %v1619 = vadd.f32 %v1485, %v1585
        %v1620 = vadd.f32 %v1486, %v1587
        %v1622 = vshrl.u32 %v328, 16
        %v1624 = vrot.slane %v1622, 4
        %v1625 = vshll.u32 %v328, 16
        %v1627 = vrot.slane %v1625, 5
        %v1628 = vor.u32 %v1624, %v1627
        %v1629 = vrot.slane %v1628, 4
        %v1631 = vshll.u32 %v329, 16
        %v1633 = vrot.slane %v1631, 5
        %v1634 = vsel %vm337, %v1629, %v1633
        %v1635 = vshrl.u32 %v329, 16
        %v1637 = vrot.slane %v1635, 4
        %v1638 = vor.u32 %v1637, %v1633
        %v1639 = vrot.slane %v1638, 4
        %v1641 = vshll.u32 %v330, 16
        %v1643 = vrot.slane %v1641, 5
        %v1644 = vsel %vm337, %v1639, %v1643
        %s1645 = scalar_lea.vmem %s1, 8
        %v1646 = vld [vmem:[%s1645] sm:$0x3]
        %v1647 = vunpack.c.l.b16 %v1634
        %v1648 = vunpack.c.l.b16 %v1644
        %v1649 = vpack.c.b16 %v1648, %v1647
        %v1651 = vsel %vm772, %v1649, 0
        %v1654 = vsel %vm821, %v1646, 0
        %1656 = vmatpush.bf16.msra.mxu0 0
        %1657 = vmatpush.bf16.msra.mxu0 0
        %1658 = vmatpush.bf16.msra.mxu0 0
        %1659 = vmatpush.bf16.msra.mxu0 0
        %1660 = vmatpush.bf16.msra.mxu0 0
        %1661 = vmatpush.bf16.msra.mxu0 0
        %1662 = vmatpush.bf16.msra.mxu0 0
        %1663 = vmatpush.bf16.msra.mxu0 %v1654
        %1664 = vmatmul.bf16.gmra.mxu0 %v777
        %v1665 = vpop.f32.mrf.mxu0
        %v1666 = vadd.f32 0.0, %v1665
        %v1667 = vpop.f32.mrf.mxu0
        %v1668 = vadd.f32 0.0, %v1667
        %1669 = vmatmul.bf16.gmra.mxu0 %v780
        %v1670 = vpop.f32.mrf.mxu0
        %v1671 = vadd.f32 0.0, %v1670
        %v1672 = vpop.f32.mrf.mxu0
        %v1673 = vadd.f32 0.0, %v1672
        %1674 = vmatmul.bf16.gmra.mxu0 %v783
        %v1675 = vpop.f32.mrf.mxu0
        %v1676 = vadd.f32 0.0, %v1675
        %v1677 = vpop.f32.mrf.mxu0
        %v1678 = vadd.f32 0.0, %v1677
        %1679 = vmatmul.bf16.gmra.mxu0 %v786
        %v1680 = vpop.f32.mrf.mxu0
        %v1681 = vadd.f32 0.0, %v1680
        %v1682 = vpop.f32.mrf.mxu0
        %v1683 = vadd.f32 0.0, %v1682
        %1684 = vmatmul.bf16.gmra.mxu0 %v789
        %v1685 = vpop.f32.mrf.mxu0
        %v1686 = vadd.f32 0.0, %v1685
        %v1687 = vpop.f32.mrf.mxu0
        %v1688 = vadd.f32 0.0, %v1687
        %1689 = vmatmul.bf16.gmra.mxu0 %v792
        %v1690 = vpop.f32.mrf.mxu0
        %v1691 = vadd.f32 0.0, %v1690
        %v1692 = vpop.f32.mrf.mxu0
        %v1693 = vadd.f32 0.0, %v1692
        %1694 = vmatmul.bf16.gmra.mxu0 %v795
        %v1695 = vpop.f32.mrf.mxu0
        %v1696 = vadd.f32 0.0, %v1695
        %v1697 = vpop.f32.mrf.mxu0
        %v1698 = vadd.f32 0.0, %v1697
        %1699 = vmatmul.bf16.gmra.mxu0 %v798
        %v1700 = vpop.f32.mrf.mxu0
        %v1701 = vadd.f32 0.0, %v1700
        %v1702 = vpop.f32.mrf.mxu0
        %v1703 = vadd.f32 0.0, %v1702
        %1704 = vmatmul.bf16.gmra.mxu0 %v801
        %v1705 = vpop.f32.mrf.mxu0
        %v1706 = vadd.f32 0.0, %v1705
        %v1707 = vpop.f32.mrf.mxu0
        %v1708 = vadd.f32 0.0, %v1707
        %1709 = vmatmul.bf16.gmra.mxu0 %v804
        %v1710 = vpop.f32.mrf.mxu0
        %v1711 = vadd.f32 0.0, %v1710
        %v1712 = vpop.f32.mrf.mxu0
        %v1713 = vadd.f32 0.0, %v1712
        %1714 = vmatmul.bf16.gmra.mxu0 %v807
        %v1715 = vpop.f32.mrf.mxu0
        %v1716 = vadd.f32 0.0, %v1715
        %v1717 = vpop.f32.mrf.mxu0
        %v1718 = vadd.f32 0.0, %v1717
        %1719 = vmatmul.bf16.gmra.mxu0 %v810
        %v1720 = vpop.f32.mrf.mxu0
        %v1721 = vadd.f32 0.0, %v1720
        %v1722 = vpop.f32.mrf.mxu0
        %v1723 = vadd.f32 0.0, %v1722
        %1724 = vmatmul.bf16.gmra.mxu0 %v813
        %v1725 = vpop.f32.mrf.mxu0
        %v1726 = vadd.f32 0.0, %v1725
        %v1727 = vpop.f32.mrf.mxu0
        %v1728 = vadd.f32 0.0, %v1727
        %1729 = vmatmul.bf16.gmra.mxu0 %v816
        %v1730 = vpop.f32.mrf.mxu0
        %v1731 = vadd.f32 0.0, %v1730
        %v1732 = vpop.f32.mrf.mxu0
        %v1733 = vadd.f32 0.0, %v1732
        %1734 = vmatmul.bf16.gmra.mxu0 %v819
        %v1735 = vpop.f32.mrf.mxu0
        %v1736 = vadd.f32 0.0, %v1735
        %v1737 = vpop.f32.mrf.mxu0
        %v1738 = vadd.f32 0.0, %v1737
        %1739 = vmatmul.bf16.gmra.mxu0 %v1651
        %v1740 = vpop.f32.mrf.mxu0
        %v1741 = vadd.f32 0.0, %v1740
        %v1742 = vpop.f32.mrf.mxu0
        %v1743 = vadd.f32 0.0, %v1742
        %1744 = vdwg.mxu0
        %v1745 = vadd.f32 %v1589, %v1666
        %v1746 = vadd.f32 %v1590, %v1668
        %v1747 = vadd.f32 %v1591, %v1671
        %v1748 = vadd.f32 %v1592, %v1673
        %v1749 = vadd.f32 %v1593, %v1676
        %v1750 = vadd.f32 %v1594, %v1678
        %v1751 = vadd.f32 %v1595, %v1681
        %v1752 = vadd.f32 %v1596, %v1683
        %v1753 = vadd.f32 %v1597, %v1686
        %v1754 = vadd.f32 %v1598, %v1688
        %v1755 = vadd.f32 %v1599, %v1691
        %v1756 = vadd.f32 %v1600, %v1693
        %v1757 = vadd.f32 %v1601, %v1696
        %v1758 = vadd.f32 %v1602, %v1698
        %v1759 = vadd.f32 %v1603, %v1701
        %v1760 = vadd.f32 %v1604, %v1703
        %v1761 = vadd.f32 %v1605, %v1706
        %v1762 = vadd.f32 %v1606, %v1708
        %v1763 = vadd.f32 %v1607, %v1711
        %v1764 = vadd.f32 %v1608, %v1713
        %v1765 = vadd.f32 %v1609, %v1716
        %v1766 = vadd.f32 %v1610, %v1718
        %v1767 = vadd.f32 %v1611, %v1721
        %v1768 = vadd.f32 %v1612, %v1723
        %v1769 = vadd.f32 %v1613, %v1726
        %v1770 = vadd.f32 %v1614, %v1728
        %v1771 = vadd.f32 %v1615, %v1731
        %v1772 = vadd.f32 %v1616, %v1733
        %v1773 = vadd.f32 %v1617, %v1736
        %v1774 = vadd.f32 %v1618, %v1738
        %v1775 = vadd.f32 %v1619, %v1741
        %v1776 = vadd.f32 %v1620, %v1743
        %v1778 = vrot.slane %v328, 5
        %v1779 = vrot.slane %v1778, 4
        %v1780 = vrot.slane %v329, 5
        %v1781 = vsel %vm1152, %v1779, %v1780
        %v1782 = vrot.slane %v1780, 4
        %v1783 = vrot.slane %v330, 5
        %v1784 = vsel %vm1152, %v1782, %v1783
        %s1785 = scalar_lea.vmem %s1, 10
        %v1786 = vld [vmem:[%s1785] sm:$0x3]
        %v1787 = vunpack.c.l.b16 %v1781
        %v1788 = vunpack.c.l.b16 %v1784
        %v1789 = vpack.c.b16 %v1788, %v1787
        %v1791 = vsel %vm772, %v1789, 0
        %v1794 = vsel %vm821, %v1786, 0
        %1796 = vmatpush.bf16.msra.mxu0 0
        %1797 = vmatpush.bf16.msra.mxu0 0
        %1798 = vmatpush.bf16.msra.mxu0 0
        %1799 = vmatpush.bf16.msra.mxu0 0
        %1800 = vmatpush.bf16.msra.mxu0 0
        %1801 = vmatpush.bf16.msra.mxu0 0
        %1802 = vmatpush.bf16.msra.mxu0 0
        %1803 = vmatpush.bf16.msra.mxu0 %v1794
        %1804 = vmatmul.bf16.gmra.mxu0 %v1319
        %v1805 = vpop.f32.mrf.mxu0
        %v1806 = vadd.f32 0.0, %v1805
        %v1807 = vpop.f32.mrf.mxu0
        %v1808 = vadd.f32 0.0, %v1807
        %1809 = vmatmul.bf16.gmra.mxu0 %v1322
        %v1810 = vpop.f32.mrf.mxu0
        %v1811 = vadd.f32 0.0, %v1810
        %v1812 = vpop.f32.mrf.mxu0
        %v1813 = vadd.f32 0.0, %v1812
        %1814 = vmatmul.bf16.gmra.mxu0 %v1325
        %v1815 = vpop.f32.mrf.mxu0
        %v1816 = vadd.f32 0.0, %v1815
        %v1817 = vpop.f32.mrf.mxu0
        %v1818 = vadd.f32 0.0, %v1817
        %1819 = vmatmul.bf16.gmra.mxu0 %v1328
        %v1820 = vpop.f32.mrf.mxu0
        %v1821 = vadd.f32 0.0, %v1820
        %v1822 = vpop.f32.mrf.mxu0
        %v1823 = vadd.f32 0.0, %v1822
        %1824 = vmatmul.bf16.gmra.mxu0 %v1331
        %v1825 = vpop.f32.mrf.mxu0
        %v1826 = vadd.f32 0.0, %v1825
        %v1827 = vpop.f32.mrf.mxu0
        %v1828 = vadd.f32 0.0, %v1827
        %1829 = vmatmul.bf16.gmra.mxu0 %v1334
        %v1830 = vpop.f32.mrf.mxu0
        %v1831 = vadd.f32 0.0, %v1830
        %v1832 = vpop.f32.mrf.mxu0
        %v1833 = vadd.f32 0.0, %v1832
        %1834 = vmatmul.bf16.gmra.mxu0 %v1337
        %v1835 = vpop.f32.mrf.mxu0
        %v1836 = vadd.f32 0.0, %v1835
        %v1837 = vpop.f32.mrf.mxu0
        %v1838 = vadd.f32 0.0, %v1837
        %1839 = vmatmul.bf16.gmra.mxu0 %v1340
        %v1840 = vpop.f32.mrf.mxu0
        %v1841 = vadd.f32 0.0, %v1840
        %v1842 = vpop.f32.mrf.mxu0
        %v1843 = vadd.f32 0.0, %v1842
        %1844 = vmatmul.bf16.gmra.mxu0 %v1343
        %v1845 = vpop.f32.mrf.mxu0
        %v1846 = vadd.f32 0.0, %v1845
        %v1847 = vpop.f32.mrf.mxu0
        %v1848 = vadd.f32 0.0, %v1847
        %1849 = vmatmul.bf16.gmra.mxu0 %v1346
        %v1850 = vpop.f32.mrf.mxu0
        %v1851 = vadd.f32 0.0, %v1850
        %v1852 = vpop.f32.mrf.mxu0
        %v1853 = vadd.f32 0.0, %v1852
        %1854 = vmatmul.bf16.gmra.mxu0 %v1349
        %v1855 = vpop.f32.mrf.mxu0
        %v1856 = vadd.f32 0.0, %v1855
        %v1857 = vpop.f32.mrf.mxu0
        %v1858 = vadd.f32 0.0, %v1857
        %1859 = vmatmul.bf16.gmra.mxu0 %v1352
        %v1860 = vpop.f32.mrf.mxu0
        %v1861 = vadd.f32 0.0, %v1860
        %v1862 = vpop.f32.mrf.mxu0
        %v1863 = vadd.f32 0.0, %v1862
        %1864 = vmatmul.bf16.gmra.mxu0 %v1355
        %v1865 = vpop.f32.mrf.mxu0
        %v1866 = vadd.f32 0.0, %v1865
        %v1867 = vpop.f32.mrf.mxu0
        %v1868 = vadd.f32 0.0, %v1867
        %1869 = vmatmul.bf16.gmra.mxu0 %v1358
        %v1870 = vpop.f32.mrf.mxu0
        %v1871 = vadd.f32 0.0, %v1870
        %v1872 = vpop.f32.mrf.mxu0
        %v1873 = vadd.f32 0.0, %v1872
        %1874 = vmatmul.bf16.gmra.mxu0 %v1361
        %v1875 = vpop.f32.mrf.mxu0
        %v1876 = vadd.f32 0.0, %v1875
        %v1877 = vpop.f32.mrf.mxu0
        %v1878 = vadd.f32 0.0, %v1877
        %1879 = vmatmul.bf16.gmra.mxu0 %v1791
        %v1880 = vpop.f32.mrf.mxu0
        %v1881 = vadd.f32 0.0, %v1880
        %v1882 = vpop.f32.mrf.mxu0
        %v1883 = vadd.f32 0.0, %v1882
        %1884 = vdwg.mxu0
        %v1885 = vadd.f32 %v1745, %v1806
        %v1886 = vadd.f32 %v1746, %v1808
        %v1887 = vadd.f32 %v1747, %v1811
        %v1888 = vadd.f32 %v1748, %v1813
        %v1889 = vadd.f32 %v1749, %v1816
        %v1890 = vadd.f32 %v1750, %v1818
        %v1891 = vadd.f32 %v1751, %v1821
        %v1892 = vadd.f32 %v1752, %v1823
        %v1893 = vadd.f32 %v1753, %v1826
        %v1894 = vadd.f32 %v1754, %v1828
        %v1895 = vadd.f32 %v1755, %v1831
        %v1896 = vadd.f32 %v1756, %v1833
        %v1897 = vadd.f32 %v1757, %v1836
        %v1898 = vadd.f32 %v1758, %v1838
        %v1899 = vadd.f32 %v1759, %v1841
        %v1900 = vadd.f32 %v1760, %v1843
        %v1901 = vadd.f32 %v1761, %v1846
        %v1902 = vadd.f32 %v1762, %v1848
        %v1903 = vadd.f32 %v1763, %v1851
        %v1904 = vadd.f32 %v1764, %v1853
        %v1905 = vadd.f32 %v1765, %v1856
        %v1906 = vadd.f32 %v1766, %v1858
        %v1907 = vadd.f32 %v1767, %v1861
        %v1908 = vadd.f32 %v1768, %v1863
        %v1909 = vadd.f32 %v1769, %v1866
        %v1910 = vadd.f32 %v1770, %v1868
        %v1911 = vadd.f32 %v1771, %v1871
        %v1912 = vadd.f32 %v1772, %v1873
        %v1913 = vadd.f32 %v1773, %v1876
        %v1914 = vadd.f32 %v1774, %v1878
        %v1915 = vadd.f32 %v1775, %v1881
        %v1916 = vadd.f32 %v1776, %v1883
        %s1917 = scalar_lea.vmem %s1, 12
        %v1918 = vld [vmem:[%s1917] sm:$0x3]
        %v1921 = vunpack.c.l.b16 %v331
        %v1922 = vunpack.c.l.b16 %v332
        %v1923 = vpack.c.b16 %v1922, %v1921
        %v1925 = vsel %vm772, %v1923, 0
        %v1928 = vsel %vm821, %v1918, 0
        %1930 = vmatpush.bf16.msra.mxu0 0
        %1931 = vmatpush.bf16.msra.mxu0 0
        %1932 = vmatpush.bf16.msra.mxu0 0
        %1933 = vmatpush.bf16.msra.mxu0 0
        %1934 = vmatpush.bf16.msra.mxu0 0
        %1935 = vmatpush.bf16.msra.mxu0 0
        %1936 = vmatpush.bf16.msra.mxu0 0
        %1937 = vmatpush.bf16.msra.mxu0 %v1928
        %1938 = vmatmul.bf16.gmra.mxu0 %v1001
        %v1939 = vpop.f32.mrf.mxu0
        %v1940 = vadd.f32 0.0, %v1939
        %v1941 = vpop.f32.mrf.mxu0
        %v1942 = vadd.f32 0.0, %v1941
        %1943 = vmatmul.bf16.gmra.mxu0 %v1004
        %v1944 = vpop.f32.mrf.mxu0
        %v1945 = vadd.f32 0.0, %v1944
        %v1946 = vpop.f32.mrf.mxu0
        %v1947 = vadd.f32 0.0, %v1946
        %1948 = vmatmul.bf16.gmra.mxu0 %v1007
        %v1949 = vpop.f32.mrf.mxu0
        %v1950 = vadd.f32 0.0, %v1949
        %v1951 = vpop.f32.mrf.mxu0
        %v1952 = vadd.f32 0.0, %v1951
        %1953 = vmatmul.bf16.gmra.mxu0 %v1010
        %v1954 = vpop.f32.mrf.mxu0
        %v1955 = vadd.f32 0.0, %v1954
        %v1956 = vpop.f32.mrf.mxu0
        %v1957 = vadd.f32 0.0, %v1956
        %1958 = vmatmul.bf16.gmra.mxu0 %v1013
        %v1959 = vpop.f32.mrf.mxu0
        %v1960 = vadd.f32 0.0, %v1959
        %v1961 = vpop.f32.mrf.mxu0
        %v1962 = vadd.f32 0.0, %v1961
        %1963 = vmatmul.bf16.gmra.mxu0 %v1016
        %v1964 = vpop.f32.mrf.mxu0
        %v1965 = vadd.f32 0.0, %v1964
        %v1966 = vpop.f32.mrf.mxu0
        %v1967 = vadd.f32 0.0, %v1966
        %1968 = vmatmul.bf16.gmra.mxu0 %v1019
        %v1969 = vpop.f32.mrf.mxu0
        %v1970 = vadd.f32 0.0, %v1969
        %v1971 = vpop.f32.mrf.mxu0
        %v1972 = vadd.f32 0.0, %v1971
        %1973 = vmatmul.bf16.gmra.mxu0 %v1022
        %v1974 = vpop.f32.mrf.mxu0
        %v1975 = vadd.f32 0.0, %v1974
        %v1976 = vpop.f32.mrf.mxu0
        %v1977 = vadd.f32 0.0, %v1976
        %1978 = vmatmul.bf16.gmra.mxu0 %v1025
        %v1979 = vpop.f32.mrf.mxu0
        %v1980 = vadd.f32 0.0, %v1979
        %v1981 = vpop.f32.mrf.mxu0
        %v1982 = vadd.f32 0.0, %v1981
        %1983 = vmatmul.bf16.gmra.mxu0 %v1028
        %v1984 = vpop.f32.mrf.mxu0
        %v1985 = vadd.f32 0.0, %v1984
        %v1986 = vpop.f32.mrf.mxu0
        %v1987 = vadd.f32 0.0, %v1986
        %1988 = vmatmul.bf16.gmra.mxu0 %v1031
        %v1989 = vpop.f32.mrf.mxu0
        %v1990 = vadd.f32 0.0, %v1989
        %v1991 = vpop.f32.mrf.mxu0
        %v1992 = vadd.f32 0.0, %v1991
        %1993 = vmatmul.bf16.gmra.mxu0 %v1034
        %v1994 = vpop.f32.mrf.mxu0
        %v1995 = vadd.f32 0.0, %v1994
        %v1996 = vpop.f32.mrf.mxu0
        %v1997 = vadd.f32 0.0, %v1996
        %1998 = vmatmul.bf16.gmra.mxu0 %v1037
        %v1999 = vpop.f32.mrf.mxu0
        %v2000 = vadd.f32 0.0, %v1999
        %v2001 = vpop.f32.mrf.mxu0
        %v2002 = vadd.f32 0.0, %v2001
        %2003 = vmatmul.bf16.gmra.mxu0 %v1040
        %v2004 = vpop.f32.mrf.mxu0
        %v2005 = vadd.f32 0.0, %v2004
        %v2006 = vpop.f32.mrf.mxu0
        %v2007 = vadd.f32 0.0, %v2006
        %2008 = vmatmul.bf16.gmra.mxu0 %v1495
        %v2009 = vpop.f32.mrf.mxu0
        %v2010 = vadd.f32 0.0, %v2009
        %v2011 = vpop.f32.mrf.mxu0
        %v2012 = vadd.f32 0.0, %v2011
        %2013 = vmatmul.bf16.gmra.mxu0 %v1925
        %v2014 = vpop.f32.mrf.mxu0
        %v2015 = vadd.f32 0.0, %v2014
        %v2016 = vpop.f32.mrf.mxu0
        %v2017 = vadd.f32 0.0, %v2016
        %2018 = vdwg.mxu0
        %v2019 = vadd.f32 %v1885, %v1940
        %v2020 = vadd.f32 %v1886, %v1942
        %v2021 = vadd.f32 %v1887, %v1945
        %v2022 = vadd.f32 %v1888, %v1947
        %v2023 = vadd.f32 %v1889, %v1950
        %v2024 = vadd.f32 %v1890, %v1952
        %v2025 = vadd.f32 %v1891, %v1955
        %v2026 = vadd.f32 %v1892, %v1957
        %v2027 = vadd.f32 %v1893, %v1960
        %v2028 = vadd.f32 %v1894, %v1962
        %v2029 = vadd.f32 %v1895, %v1965
        %v2030 = vadd.f32 %v1896, %v1967
        %v2031 = vadd.f32 %v1897, %v1970
        %v2032 = vadd.f32 %v1898, %v1972
        %v2033 = vadd.f32 %v1899, %v1975
        %v2034 = vadd.f32 %v1900, %v1977
        %v2035 = vadd.f32 %v1901, %v1980
        %v2036 = vadd.f32 %v1902, %v1982
        %v2037 = vadd.f32 %v1903, %v1985
        %v2038 = vadd.f32 %v1904, %v1987
        %v2039 = vadd.f32 %v1905, %v1990
        %v2040 = vadd.f32 %v1906, %v1992
        %v2041 = vadd.f32 %v1907, %v1995
        %v2042 = vadd.f32 %v1908, %v1997
        %v2043 = vadd.f32 %v1909, %v2000
        %v2044 = vadd.f32 %v1910, %v2002
        %v2045 = vadd.f32 %v1911, %v2005
        %v2046 = vadd.f32 %v1912, %v2007
        %v2047 = vadd.f32 %v1913, %v2010
        %v2048 = vadd.f32 %v1914, %v2012
        %v2049 = vadd.f32 %v1915, %v2015
        %v2050 = vadd.f32 %v1916, %v2017
        %v2052 = vshrl.u32 %v331, 16
        %v2054 = vrot.slane %v2052, 4
        %v2055 = vshll.u32 %v331, 16
        %v2057 = vrot.slane %v2055, 5
        %v2058 = vor.u32 %v2054, %v2057
        %v2059 = vrot.slane %v2058, 4
        %v2061 = vshll.u32 %v332, 16
        %v2063 = vrot.slane %v2061, 5
        %v2064 = vsel %vm337, %v2059, %v2063
        %v2065 = vshrl.u32 %v332, 16
        %v2067 = vrot.slane %v2065, 4
        %v2068 = vor.u32 %v2067, %v2063
        %v2069 = vrot.slane %v2068, 4
        %v2071 = vshll.u32 %v333, 16
        %v2073 = vrot.slane %v2071, 5
        %v2074 = vsel %vm337, %v2069, %v2073
        %s2075 = scalar_lea.vmem %s1, 14
        %v2076 = vld [vmem:[%s2075] sm:$0x3]
        %v2077 = vunpack.c.l.b16 %v2064
        %v2078 = vunpack.c.l.b16 %v2074
        %v2079 = vpack.c.b16 %v2078, %v2077
        %v2081 = vsel %vm772, %v2079, 0
        %v2084 = vsel %vm821, %v2076, 0
        %2086 = vmatpush.bf16.msra.mxu0 0
        %2087 = vmatpush.bf16.msra.mxu0 0
        %2088 = vmatpush.bf16.msra.mxu0 0
        %2089 = vmatpush.bf16.msra.mxu0 0
        %2090 = vmatpush.bf16.msra.mxu0 0
        %2091 = vmatpush.bf16.msra.mxu0 0
        %2092 = vmatpush.bf16.msra.mxu0 0
        %2093 = vmatpush.bf16.msra.mxu0 %v2084
        %2094 = vmatmul.bf16.gmra.mxu0 %v780
        %v2095 = vpop.f32.mrf.mxu0
        %v2096 = vadd.f32 0.0, %v2095
        %v2097 = vpop.f32.mrf.mxu0
        %v2098 = vadd.f32 0.0, %v2097
        %2099 = vmatmul.bf16.gmra.mxu0 %v783
        %v2100 = vpop.f32.mrf.mxu0
        %v2101 = vadd.f32 0.0, %v2100
        %v2102 = vpop.f32.mrf.mxu0
        %v2103 = vadd.f32 0.0, %v2102
        %2104 = vmatmul.bf16.gmra.mxu0 %v786
        %v2105 = vpop.f32.mrf.mxu0
        %v2106 = vadd.f32 0.0, %v2105
        %v2107 = vpop.f32.mrf.mxu0
        %v2108 = vadd.f32 0.0, %v2107
        %2109 = vmatmul.bf16.gmra.mxu0 %v789
        %v2110 = vpop.f32.mrf.mxu0
        %v2111 = vadd.f32 0.0, %v2110
        %v2112 = vpop.f32.mrf.mxu0
        %v2113 = vadd.f32 0.0, %v2112
        %2114 = vmatmul.bf16.gmra.mxu0 %v792
        %v2115 = vpop.f32.mrf.mxu0
        %v2116 = vadd.f32 0.0, %v2115
        %v2117 = vpop.f32.mrf.mxu0
        %v2118 = vadd.f32 0.0, %v2117
        %2119 = vmatmul.bf16.gmra.mxu0 %v795
        %v2120 = vpop.f32.mrf.mxu0
        %v2121 = vadd.f32 0.0, %v2120
        %v2122 = vpop.f32.mrf.mxu0
        %v2123 = vadd.f32 0.0, %v2122
        %2124 = vmatmul.bf16.gmra.mxu0 %v798
        %v2125 = vpop.f32.mrf.mxu0
        %v2126 = vadd.f32 0.0, %v2125
        %v2127 = vpop.f32.mrf.mxu0
        %v2128 = vadd.f32 0.0, %v2127
        %2129 = vmatmul.bf16.gmra.mxu0 %v801
        %v2130 = vpop.f32.mrf.mxu0
        %v2131 = vadd.f32 0.0, %v2130
        %v2132 = vpop.f32.mrf.mxu0
        %v2133 = vadd.f32 0.0, %v2132
        %2134 = vmatmul.bf16.gmra.mxu0 %v804
        %v2135 = vpop.f32.mrf.mxu0
        %v2136 = vadd.f32 0.0, %v2135
        %v2137 = vpop.f32.mrf.mxu0
        %v2138 = vadd.f32 0.0, %v2137
        %2139 = vmatmul.bf16.gmra.mxu0 %v807
        %v2140 = vpop.f32.mrf.mxu0
        %v2141 = vadd.f32 0.0, %v2140
        %v2142 = vpop.f32.mrf.mxu0
        %v2143 = vadd.f32 0.0, %v2142
        %2144 = vmatmul.bf16.gmra.mxu0 %v810
        %v2145 = vpop.f32.mrf.mxu0
        %v2146 = vadd.f32 0.0, %v2145
        %v2147 = vpop.f32.mrf.mxu0
        %v2148 = vadd.f32 0.0, %v2147
        %2149 = vmatmul.bf16.gmra.mxu0 %v813
        %v2150 = vpop.f32.mrf.mxu0
        %v2151 = vadd.f32 0.0, %v2150
        %v2152 = vpop.f32.mrf.mxu0
        %v2153 = vadd.f32 0.0, %v2152
        %2154 = vmatmul.bf16.gmra.mxu0 %v816
        %v2155 = vpop.f32.mrf.mxu0
        %v2156 = vadd.f32 0.0, %v2155
        %v2157 = vpop.f32.mrf.mxu0
        %v2158 = vadd.f32 0.0, %v2157
        %2159 = vmatmul.bf16.gmra.mxu0 %v819
        %v2160 = vpop.f32.mrf.mxu0
        %v2161 = vadd.f32 0.0, %v2160
        %v2162 = vpop.f32.mrf.mxu0
        %v2163 = vadd.f32 0.0, %v2162
        %2164 = vmatmul.bf16.gmra.mxu0 %v1651
        %v2165 = vpop.f32.mrf.mxu0
        %v2166 = vadd.f32 0.0, %v2165
        %v2167 = vpop.f32.mrf.mxu0
        %v2168 = vadd.f32 0.0, %v2167
        %2169 = vmatmul.bf16.gmra.mxu0 %v2081
        %v2170 = vpop.f32.mrf.mxu0
        %v2171 = vadd.f32 0.0, %v2170
        %v2172 = vpop.f32.mrf.mxu0
        %v2173 = vadd.f32 0.0, %v2172
        %2174 = vdwg.mxu0
        %v2175 = vadd.f32 %v2019, %v2096
        %v2176 = vadd.f32 %v2020, %v2098
        %v2177 = vadd.f32 %v2021, %v2101
        %v2178 = vadd.f32 %v2022, %v2103
        %v2179 = vadd.f32 %v2023, %v2106
        %v2180 = vadd.f32 %v2024, %v2108
        %v2181 = vadd.f32 %v2025, %v2111
        %v2182 = vadd.f32 %v2026, %v2113
        %v2183 = vadd.f32 %v2027, %v2116
        %v2184 = vadd.f32 %v2028, %v2118
        %v2185 = vadd.f32 %v2029, %v2121
        %v2186 = vadd.f32 %v2030, %v2123
        %v2187 = vadd.f32 %v2031, %v2126
        %v2188 = vadd.f32 %v2032, %v2128
        %v2189 = vadd.f32 %v2033, %v2131
        %v2190 = vadd.f32 %v2034, %v2133
        %v2191 = vadd.f32 %v2035, %v2136
        %v2192 = vadd.f32 %v2036, %v2138
        %v2193 = vadd.f32 %v2037, %v2141
        %v2194 = vadd.f32 %v2038, %v2143
        %v2195 = vadd.f32 %v2039, %v2146
        %v2196 = vadd.f32 %v2040, %v2148
        %v2197 = vadd.f32 %v2041, %v2151
        %v2198 = vadd.f32 %v2042, %v2153
        %v2199 = vadd.f32 %v2043, %v2156
        %v2200 = vadd.f32 %v2044, %v2158
        %v2201 = vadd.f32 %v2045, %v2161
        %v2202 = vadd.f32 %v2046, %v2163
        %v2203 = vadd.f32 %v2047, %v2166
        %v2204 = vadd.f32 %v2048, %v2168
        %v2205 = vadd.f32 %v2049, %v2171
        %v2206 = vadd.f32 %v2050, %v2173
        %v2208 = vrot.slane %v331, 5
        %v2209 = vrot.slane %v2208, 4
        %v2210 = vrot.slane %v332, 5
        %v2211 = vsel %vm1152, %v2209, %v2210
        %v2212 = vrot.slane %v2210, 4
        %v2213 = vrot.slane %v333, 5
        %v2214 = vsel %vm1152, %v2212, %v2213
        %s2215 = scalar_lea.vmem %s1, 16
        %v2216 = vld [vmem:[%s2215] sm:$0x3]
        %v2217 = vunpack.c.l.b16 %v2211
        %v2218 = vunpack.c.l.b16 %v2214
        %v2219 = vpack.c.b16 %v2218, %v2217
        %v2221 = vsel %vm772, %v2219, 0
        %v2224 = vsel %vm821, %v2216, 0
        %2226 = vmatpush.bf16.msra.mxu0 0
        %2227 = vmatpush.bf16.msra.mxu0 0
        %2228 = vmatpush.bf16.msra.mxu0 0
        %2229 = vmatpush.bf16.msra.mxu0 0
        %2230 = vmatpush.bf16.msra.mxu0 0
        %2231 = vmatpush.bf16.msra.mxu0 0
        %2232 = vmatpush.bf16.msra.mxu0 0
        %2233 = vmatpush.bf16.msra.mxu0 %v2224
        %2234 = vmatmul.bf16.gmra.mxu0 %v1322
        %v2235 = vpop.f32.mrf.mxu0
        %v2236 = vadd.f32 0.0, %v2235
        %v2237 = vpop.f32.mrf.mxu0
        %v2238 = vadd.f32 0.0, %v2237
        %2239 = vmatmul.bf16.gmra.mxu0 %v1325
        %v2240 = vpop.f32.mrf.mxu0
        %v2241 = vadd.f32 0.0, %v2240
        %v2242 = vpop.f32.mrf.mxu0
        %v2243 = vadd.f32 0.0, %v2242
        %2244 = vmatmul.bf16.gmra.mxu0 %v1328
        %v2245 = vpop.f32.mrf.mxu0
        %v2246 = vadd.f32 0.0, %v2245
        %v2247 = vpop.f32.mrf.mxu0
        %v2248 = vadd.f32 0.0, %v2247
        %2249 = vmatmul.bf16.gmra.mxu0 %v1331
        %v2250 = vpop.f32.mrf.mxu0
        %v2251 = vadd.f32 0.0, %v2250
        %v2252 = vpop.f32.mrf.mxu0
        %v2253 = vadd.f32 0.0, %v2252
        %2254 = vmatmul.bf16.gmra.mxu0 %v1334
        %v2255 = vpop.f32.mrf.mxu0
        %v2256 = vadd.f32 0.0, %v2255
        %v2257 = vpop.f32.mrf.mxu0
        %v2258 = vadd.f32 0.0, %v2257
        %2259 = vmatmul.bf16.gmra.mxu0 %v1337
        %v2260 = vpop.f32.mrf.mxu0
        %v2261 = vadd.f32 0.0, %v2260
        %v2262 = vpop.f32.mrf.mxu0
        %v2263 = vadd.f32 0.0, %v2262
        %2264 = vmatmul.bf16.gmra.mxu0 %v1340
        %v2265 = vpop.f32.mrf.mxu0
        %v2266 = vadd.f32 0.0, %v2265
        %v2267 = vpop.f32.mrf.mxu0
        %v2268 = vadd.f32 0.0, %v2267
        %2269 = vmatmul.bf16.gmra.mxu0 %v1343
        %v2270 = vpop.f32.mrf.mxu0
        %v2271 = vadd.f32 0.0, %v2270
        %v2272 = vpop.f32.mrf.mxu0
        %v2273 = vadd.f32 0.0, %v2272
        %2274 = vmatmul.bf16.gmra.mxu0 %v1346
        %v2275 = vpop.f32.mrf.mxu0
        %v2276 = vadd.f32 0.0, %v2275
        %v2277 = vpop.f32.mrf.mxu0
        %v2278 = vadd.f32 0.0, %v2277
        %2279 = vmatmul.bf16.gmra.mxu0 %v1349
        %v2280 = vpop.f32.mrf.mxu0
        %v2281 = vadd.f32 0.0, %v2280
        %v2282 = vpop.f32.mrf.mxu0
        %v2283 = vadd.f32 0.0, %v2282
        %2284 = vmatmul.bf16.gmra.mxu0 %v1352
        %v2285 = vpop.f32.mrf.mxu0
        %v2286 = vadd.f32 0.0, %v2285
        %v2287 = vpop.f32.mrf.mxu0
        %v2288 = vadd.f32 0.0, %v2287
        %2289 = vmatmul.bf16.gmra.mxu0 %v1355
        %v2290 = vpop.f32.mrf.mxu0
        %v2291 = vadd.f32 0.0, %v2290
        %v2292 = vpop.f32.mrf.mxu0
        %v2293 = vadd.f32 0.0, %v2292
        %2294 = vmatmul.bf16.gmra.mxu0 %v1358
        %v2295 = vpop.f32.mrf.mxu0
        %v2296 = vadd.f32 0.0, %v2295
        %v2297 = vpop.f32.mrf.mxu0
        %v2298 = vadd.f32 0.0, %v2297
        %2299 = vmatmul.bf16.gmra.mxu0 %v1361
        %v2300 = vpop.f32.mrf.mxu0
        %v2301 = vadd.f32 0.0, %v2300
        %v2302 = vpop.f32.mrf.mxu0
        %v2303 = vadd.f32 0.0, %v2302
        %2304 = vmatmul.bf16.gmra.mxu0 %v1791
        %v2305 = vpop.f32.mrf.mxu0
        %v2306 = vadd.f32 0.0, %v2305
        %v2307 = vpop.f32.mrf.mxu0
        %v2308 = vadd.f32 0.0, %v2307
        %2309 = vmatmul.bf16.gmra.mxu0 %v2221
        %v2310 = vpop.f32.mrf.mxu0
        %v2311 = vadd.f32 0.0, %v2310
        %v2312 = vpop.f32.mrf.mxu0
        %v2313 = vadd.f32 0.0, %v2312
        %2314 = vdwg.mxu0
        %v2315 = vadd.f32 %v2175, %v2236
        %v2316 = vadd.f32 %v2176, %v2238
        %v2317 = vadd.f32 %v2177, %v2241
        %v2318 = vadd.f32 %v2178, %v2243
        %v2319 = vadd.f32 %v2179, %v2246
        %v2320 = vadd.f32 %v2180, %v2248
        %v2321 = vadd.f32 %v2181, %v2251
        %v2322 = vadd.f32 %v2182, %v2253
        %v2323 = vadd.f32 %v2183, %v2256
        %v2324 = vadd.f32 %v2184, %v2258
        %v2325 = vadd.f32 %v2185, %v2261
        %v2326 = vadd.f32 %v2186, %v2263
        %v2327 = vadd.f32 %v2187, %v2266
        %v2328 = vadd.f32 %v2188, %v2268
        %v2329 = vadd.f32 %v2189, %v2271
        %v2330 = vadd.f32 %v2190, %v2273
        %v2331 = vadd.f32 %v2191, %v2276
        %v2332 = vadd.f32 %v2192, %v2278
        %v2333 = vadd.f32 %v2193, %v2281
        %v2334 = vadd.f32 %v2194, %v2283
        %v2335 = vadd.f32 %v2195, %v2286
        %v2336 = vadd.f32 %v2196, %v2288
        %v2337 = vadd.f32 %v2197, %v2291
        %v2338 = vadd.f32 %v2198, %v2293
        %v2339 = vadd.f32 %v2199, %v2296
        %v2340 = vadd.f32 %v2200, %v2298
        %v2341 = vadd.f32 %v2201, %v2301
        %v2342 = vadd.f32 %v2202, %v2303
        %v2343 = vadd.f32 %v2203, %v2306
        %v2344 = vadd.f32 %v2204, %v2308
        %v2345 = vadd.f32 %v2205, %v2311
        %v2346 = vadd.f32 %v2206, %v2313
        %s2347 = smul.u32 %s20, 256
        %s2348 = scalar_lea.vmem [#allocation2], %s2347
        %2349 = vst [vmem:[%s2348] sm:$0xff] %v2315
        %2350 = vst [vmem:[%s2348 + $0x8] sm:$0xff] %v2316
        %2351 = vst [vmem:[%s2348 + $0x10] sm:$0xff] %v2317
        %2352 = vst [vmem:[%s2348 + $0x18] sm:$0xff] %v2318
        %2353 = vst [vmem:[%s2348 + $0x20] sm:$0xff] %v2319
        %2354 = vst [vmem:[%s2348 + $0x28] sm:$0xff] %v2320
        %2355 = vst [vmem:[%s2348 + $0x30] sm:$0xff] %v2321
        %2356 = vst [vmem:[%s2348 + $0x38] sm:$0xff] %v2322
        %2357 = vst [vmem:[%s2348 + $0x40] sm:$0xff] %v2323
        %2358 = vst [vmem:[%s2348 + $0x48] sm:$0xff] %v2324
        %2359 = vst [vmem:[%s2348 + $0x50] sm:$0xff] %v2325
        %2360 = vst [vmem:[%s2348 + $0x58] sm:$0xff] %v2326
        %2361 = vst [vmem:[%s2348 + $0x60] sm:$0xff] %v2327
        %2362 = vst [vmem:[%s2348 + $0x68] sm:$0xff] %v2328
        %2363 = vst [vmem:[%s2348 + $0x70] sm:$0xff] %v2329
        %2364 = vst [vmem:[%s2348 + $0x78] sm:$0xff] %v2330
        %2365 = vst [vmem:[%s2348 + $0x80] sm:$0xff] %v2331
        %2366 = vst [vmem:[%s2348 + $0x88] sm:$0xff] %v2332
        %2367 = vst [vmem:[%s2348 + $0x90] sm:$0xff] %v2333
        %2368 = vst [vmem:[%s2348 + $0x98] sm:$0xff] %v2334
        %2369 = vst [vmem:[%s2348 + $0xa0] sm:$0xff] %v2335
        %2370 = vst [vmem:[%s2348 + $0xa8] sm:$0xff] %v2336
        %2371 = vst [vmem:[%s2348 + $0xb0] sm:$0xff] %v2337
        %2372 = vst [vmem:[%s2348 + $0xb8] sm:$0xff] %v2338
        %2373 = vst [vmem:[%s2348 + $0xc0] sm:$0xff] %v2339
        %2374 = vst [vmem:[%s2348 + $0xc8] sm:$0xff] %v2340
        %2375 = vst [vmem:[%s2348 + $0xd0] sm:$0xff] %v2341
        %2376 = vst [vmem:[%s2348 + $0xd8] sm:$0xff] %v2342
        %2377 = vst [vmem:[%s2348 + $0xe0] sm:$0xff] %v2343
        %2378 = vst [vmem:[%s2348 + $0xe8] sm:$0xff] %v2344
        %2379 = vst [vmem:[%s2348 + $0xf0] sm:$0xff] %v2345
        %2380 = vst [vmem:[%s2348 + $0xf8] sm:$0xff] %v2346
        %v2381 = vld [vmem:[#allocation3] sm:$0x1]
        %v2382 = vadd.f32 %v2315, %v2316
        %v2383 = vadd.f32 %v2382, %v2317
        %v2384 = vadd.f32 %v2383, %v2318
        %v2385 = vadd.f32 %v2384, %v2319
        %v2386 = vadd.f32 %v2385, %v2320
        %v2387 = vadd.f32 %v2386, %v2321
        %v2388 = vadd.f32 %v2387, %v2322
        %v2389 = vadd.f32 %v2388, %v2323
        %v2390 = vadd.f32 %v2389, %v2324
        %v2391 = vadd.f32 %v2390, %v2325
        %v2392 = vadd.f32 %v2391, %v2326
        %v2393 = vadd.f32 %v2392, %v2327
        %v2394 = vadd.f32 %v2393, %v2328
        %v2395 = vadd.f32 %v2394, %v2329
        %v2396 = vadd.f32 %v2395, %v2330
        %v2397 = vadd.f32 %v2396, %v2331
        %v2398 = vadd.f32 %v2397, %v2332
        %v2399 = vadd.f32 %v2398, %v2333
        %v2400 = vadd.f32 %v2399, %v2334
        %v2401 = vadd.f32 %v2400, %v2335
        %v2402 = vadd.f32 %v2401, %v2336
        %v2403 = vadd.f32 %v2402, %v2337
        %v2404 = vadd.f32 %v2403, %v2338
        %v2405 = vadd.f32 %v2404, %v2339
        %v2406 = vadd.f32 %v2405, %v2340
        %v2407 = vadd.f32 %v2406, %v2341
        %v2408 = vadd.f32 %v2407, %v2342
        %v2409 = vadd.f32 %v2408, %v2343
        %v2410 = vadd.f32 %v2409, %v2344
        %v2411 = vadd.f32 %v2410, %v2345
        %v2412 = vadd.f32 %v2411, %v2346
        %v2413 = vrot.slane %v2412, 4
        %v2414 = vadd.f32 %v2412, %v2413
        %v2415 = vrot.slane %v2414, 2
        %v2416 = vadd.f32 %v2414, %v2415
        %v2417 = vrot.slane %v2416, 1
        %v2418 = vadd.f32 %v2416, %v2417
        %v2419 = vadd.f32 %v2381, %v2418
        %2420 = vst [vmem:[#allocation3] sm:$0x1] %v2419
        %v2421 = vld [vmem:[#allocation4] sm:$0x1]
        %v2422 = vmul.f32 %v2315, %v2315
        %v2423 = vmul.f32 %v2316, %v2316
        %v2424 = vmul.f32 %v2317, %v2317
        %v2425 = vmul.f32 %v2318, %v2318
        %v2426 = vmul.f32 %v2319, %v2319
        %v2427 = vmul.f32 %v2320, %v2320
        %v2428 = vmul.f32 %v2321, %v2321
        %v2429 = vmul.f32 %v2322, %v2322
        %v2430 = vmul.f32 %v2323, %v2323
        %v2431 = vmul.f32 %v2324, %v2324
        %v2432 = vmul.f32 %v2325, %v2325
        %v2433 = vmul.f32 %v2326, %v2326
        %v2434 = vmul.f32 %v2327, %v2327
        %v2435 = vmul.f32 %v2328, %v2328
        %v2436 = vmul.f32 %v2329, %v2329
        %v2437 = vmul.f32 %v2330, %v2330
        %v2438 = vmul.f32 %v2331, %v2331
        %v2439 = vmul.f32 %v2332, %v2332
        %v2440 = vmul.f32 %v2333, %v2333
        %v2441 = vmul.f32 %v2334, %v2334
        %v2442 = vmul.f32 %v2335, %v2335
        %v2443 = vmul.f32 %v2336, %v2336
        %v2444 = vmul.f32 %v2337, %v2337
        %v2445 = vmul.f32 %v2338, %v2338
        %v2446 = vmul.f32 %v2339, %v2339
        %v2447 = vmul.f32 %v2340, %v2340
        %v2448 = vmul.f32 %v2341, %v2341
        %v2449 = vmul.f32 %v2342, %v2342
        %v2450 = vmul.f32 %v2343, %v2343
        %v2451 = vmul.f32 %v2344, %v2344
        %v2452 = vmul.f32 %v2345, %v2345
        %v2453 = vmul.f32 %v2346, %v2346
        %v2454 = vadd.f32 %v2422, %v2423
        %v2455 = vadd.f32 %v2454, %v2424
        %v2456 = vadd.f32 %v2455, %v2425
        %v2457 = vadd.f32 %v2456, %v2426
        %v2458 = vadd.f32 %v2457, %v2427
        %v2459 = vadd.f32 %v2458, %v2428
        %v2460 = vadd.f32 %v2459, %v2429
        %v2461 = vadd.f32 %v2460, %v2430
        %v2462 = vadd.f32 %v2461, %v2431
        %v2463 = vadd.f32 %v2462, %v2432
        %v2464 = vadd.f32 %v2463, %v2433
        %v2465 = vadd.f32 %v2464, %v2434
        %v2466 = vadd.f32 %v2465, %v2435
        %v2467 = vadd.f32 %v2466, %v2436
        %v2468 = vadd.f32 %v2467, %v2437
        %v2469 = vadd.f32 %v2468, %v2438
        %v2470 = vadd.f32 %v2469, %v2439
        %v2471 = vadd.f32 %v2470, %v2440
        %v2472 = vadd.f32 %v2471, %v2441
        %v2473 = vadd.f32 %v2472, %v2442
        %v2474 = vadd.f32 %v2473, %v2443
        %v2475 = vadd.f32 %v2474, %v2444
        %v2476 = vadd.f32 %v2475, %v2445
        %v2477 = vadd.f32 %v2476, %v2446
        %v2478 = vadd.f32 %v2477, %v2447
        %v2479 = vadd.f32 %v2478, %v2448
        %v2480 = vadd.f32 %v2479, %v2449
        %v2481 = vadd.f32 %v2480, %v2450
        %v2482 = vadd.f32 %v2481, %v2451
        %v2483 = vadd.f32 %v2482, %v2452
        %v2484 = vadd.f32 %v2483, %v2453
        %v2485 = vrot.slane %v2484, 4
        %v2486 = vadd.f32 %v2484, %v2485
        %v2487 = vrot.slane %v2486, 2
        %v2488 = vadd.f32 %v2486, %v2487
        %v2489 = vrot.slane %v2488, 1
        %v2490 = vadd.f32 %v2488, %v2489
        %v2491 = vadd.f32 %v2421, %v2490
        %2492 = vst [vmem:[#allocation4] sm:$0x1] %v2491
      $region44: #{mobilenet_v3_block.1} parent=35 // pred_fallthru
        _
      %p2493 = scmp.eq.s32.totalorder %s19, 1
      %p2494 = pnand %p2493, %p238
      %p2495 = pneg %p2494
      // Predicated region
      $region45: #{mobilenet_v3_block.1} parent=35 // pred_check
        _
      $region46: #{mobilenet_v3_block.1} parent=35 // pred_check_branch
        %2497 = sbr.rel (%p2494) target = $region48
      $region47: #{mobilenet_v3_block.1} parent=35 // pred_region
        %v2498 = vld [vmem:[#allocation3] sm:$0x1]
        %v2499 = vmul.f32 %v2498, 0.001953125
        %v2500 = vld [vmem:[#allocation4] sm:$0x1]
        %v2501 = vmul.f32 %v2500, 0.001953125
        %v2502 = vmul.f32 %v2499, %v2499
        %v2503 = vsub.f32 %v2501, %v2502
        %v2504 = vmax.f32 %v2503, 0.0
        %v2505 = vld [vmem:[%s2] sm:$0x1]
        %v2506 = vadd.f32 %v2504, 1e-05
        %v2507 = vrsqrt.pop %v2506
        %v2508 = vmul.f32 %v2507, %v2506
        %v2509 = vmul.f32 %v2508, %v2507
        %v2510 = vmul.f32 0.5, %v2509
        %v2511 = vsub.f32 1.5, %v2510
        %v2512 = vmul.f32 %v2507, %v2511
        %vm2513 = vweird.f32 %v2506
        %vm2514 = vweird.f32 %v2507
        %vm2515 = vmor %vm2513, %vm2514
        %v2516 = vsel %vm2515, %v2507, %v2512
        %v2517 = vmul.f32 %v2505, %v2516
        %2518 = vst [vmem:[#allocation5] sm:$0x1] %v2517
        %v2519 = vld [vmem:[%s3] sm:$0x1]
        %v2520 = vmul.f32 %v2499, %v2517
        %v2521 = vsub.f32 %v2519, %v2520
        %2522 = vst [vmem:[#allocation6] sm:$0x1] %v2521
      $region48: #{mobilenet_v3_block.1} parent=35 // pred_fallthru
        _
      // Predicated region
      $region49: #{mobilenet_v3_block.1} parent=35 // pred_check
        %p2523 = pneg %p2493
      $region50: #{mobilenet_v3_block.1} parent=35 // pred_check_branch
        %2525 = sbr.rel (%p2523) target = $region52
      $region51: #{mobilenet_v3_block.1} parent=35 // pred_region
        %s2526 = smul.u32 %s20, 256
        %s2527 = scalar_lea.vmem [#allocation2], %s2526
        %v2528 = vld [vmem:[%s2527] sm:$0xff]
        %v2529 = vld [vmem:[%s2527 + $0x8] sm:$0xff]
        %v2530 = vld [vmem:[%s2527 + $0x10] sm:$0xff]
        %v2531 = vld [vmem:[%s2527 + $0x18] sm:$0xff]
        %v2532 = vld [vmem:[%s2527 + $0x20] sm:$0xff]
        %v2533 = vld [vmem:[%s2527 + $0x28] sm:$0xff]
        %v2534 = vld [vmem:[%s2527 + $0x30] sm:$0xff]
        %v2535 = vld [vmem:[%s2527 + $0x38] sm:$0xff]
        %v2536 = vld [vmem:[%s2527 + $0x40] sm:$0xff]
        %v2537 = vld [vmem:[%s2527 + $0x48] sm:$0xff]
        %v2538 = vld [vmem:[%s2527 + $0x50] sm:$0xff]
        %v2539 = vld [vmem:[%s2527 + $0x58] sm:$0xff]
        %v2540 = vld [vmem:[%s2527 + $0x60] sm:$0xff]
        %v2541 = vld [vmem:[%s2527 + $0x68] sm:$0xff]
        %v2542 = vld [vmem:[%s2527 + $0x70] sm:$0xff]
        %v2543 = vld [vmem:[%s2527 + $0x78] sm:$0xff]
        %v2544 = vld [vmem:[%s2527 + $0x80] sm:$0xff]
        %v2545 = vld [vmem:[%s2527 + $0x88] sm:$0xff]
        %v2546 = vld [vmem:[%s2527 + $0x90] sm:$0xff]
        %v2547 = vld [vmem:[%s2527 + $0x98] sm:$0xff]
        %v2548 = vld [vmem:[%s2527 + $0xa0] sm:$0xff]
        %v2549 = vld [vmem:[%s2527 + $0xa8] sm:$0xff]
        %v2550 = vld [vmem:[%s2527 + $0xb0] sm:$0xff]
        %v2551 = vld [vmem:[%s2527 + $0xb8] sm:$0xff]
        %v2552 = vld [vmem:[%s2527 + $0xc0] sm:$0xff]
        %v2553 = vld [vmem:[%s2527 + $0xc8] sm:$0xff]
        %v2554 = vld [vmem:[%s2527 + $0xd0] sm:$0xff]
        %v2555 = vld [vmem:[%s2527 + $0xd8] sm:$0xff]
        %v2556 = vld [vmem:[%s2527 + $0xe0] sm:$0xff]
        %v2557 = vld [vmem:[%s2527 + $0xe8] sm:$0xff]
        %v2558 = vld [vmem:[%s2527 + $0xf0] sm:$0xff]
        %v2559 = vld [vmem:[%s2527 + $0xf8] sm:$0xff]
        %v2560 = vld [vmem:[#allocation5] sm:$0x1]
        %v2562 = vperm.slane %v2560, 0
        %v2564 = vmul.f32 %v2528, %v2562
        %v2565 = vmul.f32 %v2529, %v2562
        %v2566 = vmul.f32 %v2530, %v2562
        %v2567 = vmul.f32 %v2531, %v2562
        %v2568 = vmul.f32 %v2532, %v2562
        %v2569 = vmul.f32 %v2533, %v2562
        %v2570 = vmul.f32 %v2534, %v2562
        %v2571 = vmul.f32 %v2535, %v2562
        %v2572 = vmul.f32 %v2536, %v2562
        %v2573 = vmul.f32 %v2537, %v2562
        %v2574 = vmul.f32 %v2538, %v2562
        %v2575 = vmul.f32 %v2539, %v2562
        %v2576 = vmul.f32 %v2540, %v2562
        %v2577 = vmul.f32 %v2541, %v2562
        %v2578 = vmul.f32 %v2542, %v2562
        %v2579 = vmul.f32 %v2543, %v2562
        %v2580 = vmul.f32 %v2544, %v2562
        %v2581 = vmul.f32 %v2545, %v2562
        %v2582 = vmul.f32 %v2546, %v2562
        %v2583 = vmul.f32 %v2547, %v2562
        %v2584 = vmul.f32 %v2548, %v2562
        %v2585 = vmul.f32 %v2549, %v2562
        %v2586 = vmul.f32 %v2550, %v2562
        %v2587 = vmul.f32 %v2551, %v2562
        %v2588 = vmul.f32 %v2552, %v2562
        %v2589 = vmul.f32 %v2553, %v2562
        %v2590 = vmul.f32 %v2554, %v2562
        %v2591 = vmul.f32 %v2555, %v2562
        %v2592 = vmul.f32 %v2556, %v2562
        %v2593 = vmul.f32 %v2557, %v2562
        %v2594 = vmul.f32 %v2558, %v2562
        %v2595 = vmul.f32 %v2559, %v2562
        %v2596 = vld [vmem:[#allocation6] sm:$0x1]
        %v2598 = vperm.slane %v2596, 0
        %v2600 = vadd.f32 %v2564, %v2598
        %v2601 = vadd.f32 %v2565, %v2598
        %v2602 = vadd.f32 %v2566, %v2598
        %v2603 = vadd.f32 %v2567, %v2598
        %v2604 = vadd.f32 %v2568, %v2598
        %v2605 = vadd.f32 %v2569, %v2598
        %v2606 = vadd.f32 %v2570, %v2598
        %v2607 = vadd.f32 %v2571, %v2598
        %v2608 = vadd.f32 %v2572, %v2598
        %v2609 = vadd.f32 %v2573, %v2598
        %v2610 = vadd.f32 %v2574, %v2598
        %v2611 = vadd.f32 %v2575, %v2598
        %v2612 = vadd.f32 %v2576, %v2598
        %v2613 = vadd.f32 %v2577, %v2598
        %v2614 = vadd.f32 %v2578, %v2598
        %v2615 = vadd.f32 %v2579, %v2598
        %v2616 = vadd.f32 %v2580, %v2598
        %v2617 = vadd.f32 %v2581, %v2598
        %v2618 = vadd.f32 %v2582, %v2598
        %v2619 = vadd.f32 %v2583, %v2598
        %v2620 = vadd.f32 %v2584, %v2598
        %v2621 = vadd.f32 %v2585, %v2598
        %v2622 = vadd.f32 %v2586, %v2598
        %v2623 = vadd.f32 %v2587, %v2598
        %v2624 = vadd.f32 %v2588, %v2598
        %v2625 = vadd.f32 %v2589, %v2598
        %v2626 = vadd.f32 %v2590, %v2598
        %v2627 = vadd.f32 %v2591, %v2598
        %v2628 = vadd.f32 %v2592, %v2598
        %v2629 = vadd.f32 %v2593, %v2598
        %v2630 = vadd.f32 %v2594, %v2598
        %v2631 = vadd.f32 %v2595, %v2598
        %v2632 = vmax.f32 %v2600, 0.0
        %v2633 = vmax.f32 %v2601, 0.0
        %v2634 = vmax.f32 %v2602, 0.0
        %v2635 = vmax.f32 %v2603, 0.0
        %v2636 = vmax.f32 %v2604, 0.0
        %v2637 = vmax.f32 %v2605, 0.0
        %v2638 = vmax.f32 %v2606, 0.0
        %v2639 = vmax.f32 %v2607, 0.0
        %v2640 = vmax.f32 %v2608, 0.0
        %v2641 = vmax.f32 %v2609, 0.0
        %v2642 = vmax.f32 %v2610, 0.0
        %v2643 = vmax.f32 %v2611, 0.0
        %v2644 = vmax.f32 %v2612, 0.0
        %v2645 = vmax.f32 %v2613, 0.0
        %v2646 = vmax.f32 %v2614, 0.0
        %v2647 = vmax.f32 %v2615, 0.0
        %v2648 = vmax.f32 %v2616, 0.0
        %v2649 = vmax.f32 %v2617, 0.0
        %v2650 = vmax.f32 %v2618, 0.0
        %v2651 = vmax.f32 %v2619, 0.0
        %v2652 = vmax.f32 %v2620, 0.0
        %v2653 = vmax.f32 %v2621, 0.0
        %v2654 = vmax.f32 %v2622, 0.0
        %v2655 = vmax.f32 %v2623, 0.0
        %v2656 = vmax.f32 %v2624, 0.0
        %v2657 = vmax.f32 %v2625, 0.0
        %v2658 = vmax.f32 %v2626, 0.0
        %v2659 = vmax.f32 %v2627, 0.0
        %v2660 = vmax.f32 %v2628, 0.0
        %v2661 = vmax.f32 %v2629, 0.0
        %v2662 = vmax.f32 %v2630, 0.0
        %v2663 = vmax.f32 %v2631, 0.0
        %2664 = vst [vmem:[%s234] sm:$0xff] %v2632
        %2665 = vst [vmem:[%s234 + $0x8] sm:$0xff] %v2633
        %2666 = vst [vmem:[%s234 + $0x10] sm:$0xff] %v2634
        %2667 = vst [vmem:[%s234 + $0x18] sm:$0xff] %v2635
        %2668 = vst [vmem:[%s234 + $0x20] sm:$0xff] %v2636
        %2669 = vst [vmem:[%s234 + $0x28] sm:$0xff] %v2637
        %2670 = vst [vmem:[%s234 + $0x30] sm:$0xff] %v2638
        %2671 = vst [vmem:[%s234 + $0x38] sm:$0xff] %v2639
        %2672 = vst [vmem:[%s234 + $0x40] sm:$0xff] %v2640
        %2673 = vst [vmem:[%s234 + $0x48] sm:$0xff] %v2641
        %2674 = vst [vmem:[%s234 + $0x50] sm:$0xff] %v2642
        %2675 = vst [vmem:[%s234 + $0x58] sm:$0xff] %v2643
        %2676 = vst [vmem:[%s234 + $0x60] sm:$0xff] %v2644
        %2677 = vst [vmem:[%s234 + $0x68] sm:$0xff] %v2645
        %2678 = vst [vmem:[%s234 + $0x70] sm:$0xff] %v2646
        %2679 = vst [vmem:[%s234 + $0x78] sm:$0xff] %v2647
        %2680 = vst [vmem:[%s234 + $0x80] sm:$0xff] %v2648
        %2681 = vst [vmem:[%s234 + $0x88] sm:$0xff] %v2649
        %2682 = vst [vmem:[%s234 + $0x90] sm:$0xff] %v2650
        %2683 = vst [vmem:[%s234 + $0x98] sm:$0xff] %v2651
        %2684 = vst [vmem:[%s234 + $0xa0] sm:$0xff] %v2652
        %2685 = vst [vmem:[%s234 + $0xa8] sm:$0xff] %v2653
        %2686 = vst [vmem:[%s234 + $0xb0] sm:$0xff] %v2654
        %2687 = vst [vmem:[%s234 + $0xb8] sm:$0xff] %v2655
        %2688 = vst [vmem:[%s234 + $0xc0] sm:$0xff] %v2656
        %2689 = vst [vmem:[%s234 + $0xc8] sm:$0xff] %v2657
        %2690 = vst [vmem:[%s234 + $0xd0] sm:$0xff] %v2658
        %2691 = vst [vmem:[%s234 + $0xd8] sm:$0xff] %v2659
        %2692 = vst [vmem:[%s234 + $0xe0] sm:$0xff] %v2660
        %2693 = vst [vmem:[%s234 + $0xe8] sm:$0xff] %v2661
        %2694 = vst [vmem:[%s234 + $0xf0] sm:$0xff] %v2662
        %2695 = vst [vmem:[%s234 + $0xf8] sm:$0xff] %v2663
      $region52: #{mobilenet_v3_block.1} parent=35 // pred_fallthru
        _
      %s2696 = smul.u32 %s20, %s19
      %p2697 = scmp.lt.s32.totalorder %s2696, 1
      %s2698 = scalar_select %p2697, %s2696, 1
      %s2699 = smul.addr %s2698, 32
      %s2700 = smul.addr %s2699, 8
      %s2701 = scalar_lea.vmem %s4, %s2700
      // Predicated region
      $region53: #{mobilenet_v3_block.1} parent=35 // pred_check
        %p2702 = pneg %p142
      $region54: #{mobilenet_v3_block.1} parent=35 // pred_check_branch
        %2704 = sbr.rel (%p2702) target = $region56
      $region55: #{mobilenet_v3_block.1} parent=35 // pred_region
        %s2705 = smul.u32 %s20, %s19
      $region56: #{mobilenet_v3_block.1} parent=35 // pred_fallthru
        _
    $region36: #{mobilenet_v3_block.1} parent=5 // pred_fallthru
      _
    %p2706 = scmp.le.s32.totalorder 2, %s10
    // Predicated region
    $region57: #{mobilenet_v3_block.1} parent=5 // pred_check
      %p2707 = pneg %p2706
    $region58: #{mobilenet_v3_block.1} parent=5 // pred_check_branch
      %2709 = sbr.rel (%p2707) target = $region60
    $region59: #{mobilenet_v3_block.1} parent=5 // pred_region
      %s2710 = ssub.s32 %s10, 2
      // Predicated region
      $region61: #{mobilenet_v3_block.1} parent=59 // pred_check
        %p2711 = pneg %p148
      $region62: #{mobilenet_v3_block.1} parent=59 // pred_check_branch
        %2713 = sbr.rel (%p2711) target = $region64
      $region63: #{mobilenet_v3_block.1} parent=59 // pred_region
        %s2714 = smul.u32 %s22, %s21
        %p2715 = scmp.lt.s32.totalorder %s2714, 1
        %s2716 = scalar_select %p2715, %s2714, 1
        %s2717 = smul.addr %s2716, 32
        %s2718 = smul.addr %s2717, 8
        %s2719 = scalar_lea.vmem %s4, %s2718
      $region64: #{mobilenet_v3_block.1} parent=59 // pred_fallthru
        _
    $region60: #{mobilenet_v3_block.1} parent=5 // pred_fallthru
      _
  $region6: #{mobilenet_v3_block.1} parent=0 // loop_footer
    %s14 = sadd.s32 1, %s10
  $region7: #{mobilenet_v3_block.1} parent=0 // loop_footer_branch
    %9 = sbr.rel target = $region3
  $region8: #{mobilenet_v3_block.1} parent=0 // loop_exit
    _

</llo_original>
